<compile_context>
chip_gen: v7x
topology: tpu7x:2x2x1
jax: 0.10.0
libtpu: 0.0.40
codegen_flags: <defaults>
</compile_context>

<pallas_src>
import functools

import jax
import jax.numpy as jnp
from jax import lax
from jax.experimental import pallas as pl
from jax.experimental.pallas import tpu as pltpu


def _round_up(x, m):
    return ((x + m - 1) // m) * m


def _vmem_footprint(t, d, in_bytes):
    """Rough per-step VMEM bytes: double-buffered input blocks (row + col
    (t,d) blocks plus four (t,1)/(1,t) f32 vectors) and ~6 live (t,t) f32
    temporaries (gram, l2, e, ksum, ...)."""
    inputs = 2 * (2 * t * d * in_bytes + 4 * t * 4)
    temps = 6 * t * t * 4
    return inputs + temps


def _choose_tile(n, d, in_bytes, vmem_budget=40 << 20, t_max=512):
    """Square tile size for the pairwise-kernel tiles.

    * multiples of 128 (lane/MXU aligned on v5e/v6e/v7x), unless the whole
      (8-padded) problem fits in a single full-extent tile;
    * VMEM footprint stays under `vmem_budget` (safe for v7x's 64 MiB VMEM;
      v5e/v6e have 128 MiB);
    * for larger problems keep >= 2 row/col blocks so the triangular pair
      enumeration has >= 3 grid steps (feeds both v7x TensorCores and bounds
      the diagonal-tile overcount).
    """
    small = _round_up(max(n, 8), 8)
    if n <= 256 and _vmem_footprint(small, d, in_bytes) <= vmem_budget:
        return small
    n128 = _round_up(n, 128)
    cap = max(128, min(t_max, n128 // 2))
    best, t = 128, 128
    while t <= cap and _vmem_footprint(t, d, in_bytes) <= vmem_budget:
        best = t
        t += 128
    return best


def _mmd_rbf_pair_kernel(bi_ref, bj_ref, neg_inv_ref, row_ref, col_ref,
                         rsq_ref, csq_ref, wrow_ref, wcol_ref, out_ref, *,
                         kernel_mul, kernel_num):
    """One upper-triangular (row-tile, col-tile) pair of the multi-scale RBF
    kernel matrix, reduced directly to a signed scalar partial sum."""
    p = pl.program_id(0)
    i = bi_ref[p]                  # row block index (SMEM scalar prefetch)
    j = bj_ref[p]                  # col block index

    # Pairwise squared L2 for this tile: cross term on the MXU; row/col
    # squared norms were precomputed once in the wrapper (hoisted out of the
    # O(pairs) loop) and arrive as tiny (T,1)/(1,T) blocks.
    gram = lax.dot_general(row_ref[...], col_ref[...],
                           (((1,), (1,)), ((), ())),
                           precision=lax.Precision.HIGHEST,
                           preferred_element_type=jnp.float32)         # (T, T)
    l2 = jnp.maximum(rsq_ref[...] + (csq_ref[...] - 2.0 * gram), 0.0)

    # Multi-scale RBF sum.  For integer kernel_mul only ONE exp hits the EUP;
    # remaining scales are repeated VPU powers:
    #   exp(-x/(bw*m^k)) ** m == exp(-x/(bw*m^(k-1))).
    if float(kernel_mul).is_integer() and kernel_mul >= 2.0:
        m = int(kernel_mul)
        e = jnp.exp(l2 * neg_inv_ref[kernel_num - 1])   # largest bandwidth
        ksum = e
        for _ in range(kernel_num - 1):
            nxt = e
            for _ in range(m - 1):
                nxt = nxt * e
            e = nxt
            ksum = ksum + e
    else:
        # General (non-integer) path: per-scale negative inverse bandwidths
        # are hoisted SMEM scalars (no per-element divide).
        ksum = jnp.exp(l2 * neg_inv_ref[0])
        for s in range(1, kernel_num):
            ksum = ksum + jnp.exp(l2 * neg_inv_ref[s])

    # Signed reduction.  K @ w_col rides the otherwise idle MXU slot; only a
    # (T,1) weighted sum remains on the VPU/XLU.  w is +1 (source), -1
    # (target), 0 (padding) -> no per-tile iota / sign masks at all.
    colred = lax.dot_general(ksum, wcol_ref[...], (((1,), (0,)), ((), ())),
                             precision=lax.Precision.HIGHEST,
                             preferred_element_type=jnp.float32)        # (T, 1)
    tile_sum = jnp.sum(colred * wrow_ref[...])
    # Off-diagonal tile pairs are enumerated once (upper triangle) -> double.
    factor = jnp.where(i == j, 1.0, 2.0)
    out_ref[...] = (factor * tile_sum).reshape(1, 1, 1)


def mmd_loss_rbf(source, target, *, kernel_mul=2.0, kernel_num=5, fix_sigma=None):
    """Pallas implementation of MMD_loss(kernel_type='rbf').forward."""
    assert source.shape == target.shape and source.ndim == 2
    b, d = source.shape
    n = 2 * b

    # ---- O(N*D) glue in the wrapper --------------------------------------
    total = jnp.concatenate([source, target], axis=0)                   # [N,D]
    # Mean-center: pairwise distances are translation invariant; centering
    # removes the f32 cancellation hazard in both the analytic bandwidth and
    # the gram-based L2.
    total_c = total.astype(jnp.float32)
    total_c = total_c - jnp.mean(total_c, axis=0, keepdims=True)

    # Keep bf16 inputs on the fast MXU path; otherwise stay in f32 (HIGHEST).
    work_dtype = jnp.bfloat16 if total.dtype == jnp.bfloat16 else jnp.float32
    total_w = total_c.astype(work_dtype)
    tw32 = total_w.astype(jnp.float32)           # exactly what the kernel sees
    sq = jnp.sum(tw32 * tw32, axis=1)                                    # [N]

    if fix_sigma is not None:
        bandwidth = jnp.float32(fix_sigma)
    else:
        # sum_ij ||x_i - x_j||^2 = 2*N*sum_i||x_i||^2 - 2*||sum_i x_i||^2
        colsum = jnp.sum(tw32, axis=0)
        l2_total = 2.0 * n * jnp.sum(sq) - 2.0 * jnp.sum(colsum * colsum)
        bandwidth = l2_total / float(n * n - n)
    bandwidth = bandwidth / (kernel_mul ** (kernel_num // 2))
    scales = jnp.asarray([kernel_mul ** s for s in range(kernel_num)],
                         dtype=jnp.float32)
    neg_inv_bw = (-1.0 / (bandwidth * scales)).astype(jnp.float32)       # [K]

    # ---- padding + per-row signed weights ---------------------------------
    in_bytes = jnp.dtype(work_dtype).itemsize
    t = _choose_tile(n, d, in_bytes)
    np_rows = _round_up(n, t)
    pad = np_rows - n

    if pad:
        total_w = jnp.concatenate(
            [total_w, jnp.zeros((pad, d), work_dtype)], axis=0)
    rsq = jnp.concatenate(
        [sq, jnp.zeros((pad,), jnp.float32)]).reshape(np_rows, 1)        # [Np,1]
    csq = rsq.reshape(1, np_rows)        # lane-oriented copy for column norms
    w = jnp.concatenate([jnp.ones((b, 1), jnp.float32),
                         -jnp.ones((b, 1), jnp.float32),
                         jnp.zeros((pad, 1), jnp.float32)], axis=0)      # [Np,1]

    # ---- upper-triangular tile-pair enumeration (symmetry => ~2x less work)
    nblk = np_rows // t
    pairs = [(pi, pj) for pi in range(nblk) for pj in range(pi, nblk)]
    num_pairs = len(pairs)
    blk_i = jnp.asarray([p[0] for p in pairs], dtype=jnp.int32)
    blk_j = jnp.asarray([p[1] for p in pairs], dtype=jnp.int32)

    integer_mul = float(kernel_mul).is_integer() and kernel_mul >= 2.0
    cost = pl.CostEstimate(
        flops=int(num_pairs * (2 * t * t * d + 2 * t * t)),
        transcendentals=int(num_pairs * t * t *
                            (1 if integer_mul else kernel_num)),
        bytes_accessed=int(num_pairs * (2 * t * d * in_bytes + 16 * t)
                           + 4 * num_pairs),
    )
    vmem_limit = int(min(48 << 20,
                         max(32 << 20, 2 * _vmem_footprint(t, d, in_bytes))))

    grid_spec = pltpu.PrefetchScalarGridSpec(
        num_scalar_prefetch=2,                   # blk_i, blk_j -> SMEM
        grid=(num_pairs,),
        in_specs=[
            pl.BlockSpec(memory_space=pltpu.MemorySpace.SMEM),        # neg_inv_bw
            pl.BlockSpec((t, d), lambda p, bi, bj: (bi[p], 0)),       # row block
            pl.BlockSpec((t, d), lambda p, bi, bj: (bj[p], 0)),       # col block
            pl.BlockSpec((t, 1), lambda p, bi, bj: (bi[p], 0)),       # row ||x||^2
            pl.BlockSpec((1, t), lambda p, bi, bj: (0, bj[p])),       # col ||x||^2
            pl.BlockSpec((t, 1), lambda p, bi, bj: (bi[p], 0)),       # row weights
            pl.BlockSpec((t, 1), lambda p, bi, bj: (bj[p], 0)),       # col weights
        ],
        out_specs=pl.BlockSpec((1, 1, 1), lambda p, bi, bj: (p, 0, 0)),
    )

    partials = pl.pallas_call(
        functools.partial(_mmd_rbf_pair_kernel,
                          kernel_mul=float(kernel_mul),
                          kernel_num=int(kernel_num)),
        out_shape=jax.ShapeDtypeStruct((num_pairs, 1, 1), jnp.float32),
        grid_spec=grid_spec,
        compiler_params=pltpu.CompilerParams(
            dimension_semantics=("parallel",),
            vmem_limit_bytes=vmem_limit),
        cost_estimate=cost,
    )(blk_i, blk_j, neg_inv_bw, total_w, total_w, rsq, csq, w, w)

    return jnp.sum(partials) / float(b * b)


def mmd_loss_linear(source, target):
    """MMD_loss(kernel_type='linear').forward — trivial O(B*D), plain JAX
    (too small to benefit from a Pallas kernel)."""
    delta = (jnp.mean(source.astype(jnp.float32), axis=0)
             - jnp.mean(target.astype(jnp.float32), axis=0))
    return jnp.dot(delta, delta)


def _mmd_loss_rbf_ref(source, target, *, kernel_mul=2.0, kernel_num=5):
    """Pure-JAX reference mirroring the PyTorch code (for verification)."""
    total = jnp.concatenate(
        [source.astype(jnp.float32), target.astype(jnp.float32)], axis=0)
    n = total.shape[0]
    b = source.shape[0]
    diff = total[None, :, :] - total[:, None, :]
    l2 = jnp.sum(diff * diff, axis=2)
    bandwidth = jnp.sum(l2) / (n * n - n)
    bandwidth = bandwidth / (kernel_mul ** (kernel_num // 2))
    kernels = sum(jnp.exp(-l2 / (bandwidth * kernel_mul ** i))
                  for i in range(kernel_num))
    xx = jnp.mean(kernels[:b, :b])
    yy = jnp.mean(kernels[b:, b:])
    xy = jnp.mean(kernels[:b, b:])
    yx = jnp.mean(kernels[b:, :b])
    return xx + yy - xy - yx


if __name__ == "__main__":
    key = jax.random.PRNGKey(0)
    k_src, k_tgt = jax.random.split(key)

    # Small case (single full-extent tile), matching the module's typical use.
    B, D = 8, 32
    source = jax.random.normal(k_src, (B, D), dtype=jnp.float32)
    target = jax.random.normal(k_tgt, (B, D), dtype=jnp.float32) + 0.5
    loss = jax.block_until_ready(mmd_loss_rbf(source, target))
    ref = _mmd_loss_rbf_ref(source, target)
    assert jnp.allclose(loss, ref, rtol=2e-4, atol=2e-4), (loss, ref)

    # Moderate case: exercises 128-row tiles, zero-weight padding and the
    # upper-triangular (symmetric) tile-pair enumeration.
    B2, D2 = 160, 32
    k_a, k_b = jax.random.split(jax.random.PRNGKey(0), 2)
    src2 = jax.random.normal(k_a, (B2, D2), dtype=jnp.float32)
    tgt2 = jax.random.normal(k_b, (B2, D2), dtype=jnp.float32) + 0.25
    loss2 = jax.block_until_ready(mmd_loss_rbf(src2, tgt2))
    ref2 = _mmd_loss_rbf_ref(src2, tgt2)
    assert jnp.allclose(loss2, ref2, rtol=2e-4, atol=2e-4), (loss2, ref2)

    print("KERNEL_OK")
</pallas_src>

<mosaic_0001>
module attributes {stable_mosaic.version = 11 : i64} {
  func.func @_mmd_rbf_pair_kernel(%arg0: i32, %arg1: memref<1xi32, #tpu.memory_space<smem>>, %arg2: memref<1xi32, #tpu.memory_space<smem>>, %arg3: memref<5xf32, #tpu.memory_space<smem>>, %arg4: memref<16x32xf32, #tpu.memory_space<vmem>>, %arg5: memref<16x32xf32, #tpu.memory_space<vmem>>, %arg6: memref<16x1xf32, #tpu.memory_space<vmem>>, %arg7: memref<1x16xf32, #tpu.memory_space<vmem>>, %arg8: memref<16x1xf32, #tpu.memory_space<vmem>>, %arg9: memref<16x1xf32, #tpu.memory_space<vmem>>, %arg10: memref<1x1x1xf32, #tpu.memory_space<vmem>>) attributes {dimension_semantics = [#tpu.dimension_semantics<parallel>], iteration_bounds = array<i64: 1>, scalar_prefetch = 2 : i64, scratch_operands = 0 : i64, tpu.core_type = #tpu.core_type<tc>, window_params = [{transform_indices = @transform_0, window_bounds = array<i64: 5>}, {transform_indices = @transform_1, window_bounds = array<i64: 16, 32>}, {transform_indices = @transform_2, window_bounds = array<i64: 16, 32>}, {transform_indices = @transform_3, window_bounds = array<i64: 16, 1>}, {transform_indices = @transform_4, window_bounds = array<i64: 1, 16>}, {transform_indices = @transform_5, window_bounds = array<i64: 16, 1>}, {transform_indices = @transform_6, window_bounds = array<i64: 16, 1>}, {transform_indices = @transform_7, window_bounds = array<i64: 1, 1, 1>}]} {
    %0 = arith.index_cast %arg0 : i32 to index
    %1 = memref.load %arg1[%0] : memref<1xi32, #tpu.memory_space<smem>>
    %2 = arith.index_cast %arg0 : i32 to index
    %3 = memref.load %arg2[%2] : memref<1xi32, #tpu.memory_space<smem>>
    %c0 = arith.constant 0 : index
    %c0_0 = arith.constant 0 : index
    %4 = vector.load %arg4[%c0, %c0_0] : memref<16x32xf32, #tpu.memory_space<vmem>>, vector<16x32xf32>
    %c0_1 = arith.constant 0 : index
    %c0_2 = arith.constant 0 : index
    %5 = vector.load %arg5[%c0_1, %c0_2] : memref<16x32xf32, #tpu.memory_space<vmem>>, vector<16x32xf32>
    %cst = arith.constant dense<0.000000e+00> : vector<16x16xf32>
    %6 = tpu.matmul %4, %5, %cst {dimension_numbers = #tpu.dot_dimension_numbers<[1], [1], [0], [0], [0, 0, 1, 0], [], []>, precision = #tpu.contract_precision<fp32>} : vector<16x32xf32>, vector<16x32xf32>, vector<16x16xf32> -> vector<16x16xf32>
    %c0_3 = arith.constant 0 : index
    %c0_4 = arith.constant 0 : index
    %7 = vector.load %arg6[%c0_3, %c0_4] : memref<16x1xf32, #tpu.memory_space<vmem>>, vector<16x1xf32>
    %c0_5 = arith.constant 0 : index
    %c0_6 = arith.constant 0 : index
    %8 = vector.load %arg7[%c0_5, %c0_6] : memref<1x16xf32, #tpu.memory_space<vmem>>, vector<1x16xf32>
    %cst_7 = arith.constant 2.000000e+00 : f32
    %9 = vector.broadcast %cst_7 : f32 to vector<16x16xf32>
    %10 = arith.mulf %9, %6 : vector<16x16xf32>
    %11 = vector.broadcast %8 : vector<1x16xf32> to vector<16x16xf32>
    %12 = arith.subf %11, %10 : vector<16x16xf32>
    %13 = vector.broadcast %7 : vector<16x1xf32> to vector<16x16xf32>
    %14 = arith.addf %13, %12 : vector<16x16xf32>
    %cst_8 = arith.constant 0.000000e+00 : f32
    %15 = vector.broadcast %cst_8 : f32 to vector<16x16xf32>
    %16 = arith.maximumf %14, %15 : vector<16x16xf32>
    %c4 = arith.constant 4 : index
    %17 = memref.load %arg3[%c4] : memref<5xf32, #tpu.memory_space<smem>>
    %18 = vector.broadcast %17 : f32 to vector<16x16xf32>
    %19 = arith.mulf %16, %18 : vector<16x16xf32>
    %20 = math.exp %19 : vector<16x16xf32>
    %21 = arith.mulf %20, %20 : vector<16x16xf32>
    %22 = arith.addf %20, %21 : vector<16x16xf32>
    %23 = arith.mulf %21, %21 : vector<16x16xf32>
    %24 = arith.addf %22, %23 : vector<16x16xf32>
    %25 = arith.mulf %23, %23 : vector<16x16xf32>
    %26 = arith.addf %24, %25 : vector<16x16xf32>
    %27 = arith.mulf %25, %25 : vector<16x16xf32>
    %28 = arith.addf %26, %27 : vector<16x16xf32>
    %c0_9 = arith.constant 0 : index
    %c0_10 = arith.constant 0 : index
    %29 = vector.load %arg9[%c0_9, %c0_10] : memref<16x1xf32, #tpu.memory_space<vmem>>, vector<16x1xf32>
    %cst_11 = arith.constant dense<0.000000e+00> : vector<16x1xf32>
    %30 = tpu.matmul %28, %29, %cst_11 {dimension_numbers = #tpu.dot_dimension_numbers<[1], [0], [0], [1], [0, 0, 1, 1], [], []>, precision = #tpu.contract_precision<fp32>} : vector<16x16xf32>, vector<16x1xf32>, vector<16x1xf32> -> vector<16x1xf32>
    %c0_12 = arith.constant 0 : index
    %c0_13 = arith.constant 0 : index
    %31 = vector.load %arg8[%c0_12, %c0_13] : memref<16x1xf32, #tpu.memory_space<vmem>>, vector<16x1xf32>
    %32 = arith.mulf %30, %31 : vector<16x1xf32>
    %33 = vector.shape_cast %32 : vector<16x1xf32> to vector<1x16x1xf32>
    %cst_14 = arith.constant dense<0.000000e+00> : vector<1xf32>
    %34 = vector.multi_reduction <add>, %33, %cst_14 [1, 2] : vector<1x16x1xf32> to vector<1xf32>
    %35 = vector.shape_cast %34 : vector<1xf32> to vector<1x1x1xf32>
    %36 = vector.extract %35[0, 0, 0] : f32 from vector<1x1x1xf32>
    %37 = arith.cmpi eq, %1, %3 : i32
    %cst_15 = arith.constant 1.000000e+00 : f32
    %cst_16 = arith.constant 2.000000e+00 : f32
    %38 = arith.select %37, %cst_15, %cst_16 : f32
    %39 = arith.mulf %38, %36 : f32
    %40 = vector.broadcast %39 : f32 to vector<1x1x1xf32>
    %c0_17 = arith.constant 0 : index
    %c0_18 = arith.constant 0 : index
    %c0_19 = arith.constant 0 : index
    %41 = vector.load %arg10[%c0_17, %c0_18, %c0_19] : memref<1x1x1xf32, #tpu.memory_space<vmem>>, vector<1x1x1xf32>
    tpu.vector_store %arg10[%c0_17, %c0_18, %c0_19], %40 {strides = array<i32>} : memref<1x1x1xf32, #tpu.memory_space<vmem>>, vector<1x1x1xf32>,
    return
  }
  func.func @transform_0(%arg0: i32, %arg1: memref<1xi32, #tpu.memory_space<smem>>, %arg2: memref<1xi32, #tpu.memory_space<smem>>) -> i32 {
    %c0_i32 = arith.constant 0 : i32
    %c0_i32_0 = arith.constant 0 : i32
    return %c0_i32 : i32
  }
  func.func @transform_1(%arg0: i32, %arg1: memref<1xi32, #tpu.memory_space<smem>>, %arg2: memref<1xi32, #tpu.memory_space<smem>>) -> (i32, i32) {
    %0 = arith.index_cast %arg0 : i32 to index
    %1 = memref.load %arg1[%0] : memref<1xi32, #tpu.memory_space<smem>>
    %c0_i32 = arith.constant 0 : i32
    %c0_i32_0 = arith.constant 0 : i32
    return %1, %c0_i32 : i32, i32
  }
  func.func @transform_2(%arg0: i32, %arg1: memref<1xi32, #tpu.memory_space<smem>>, %arg2: memref<1xi32, #tpu.memory_space<smem>>) -> (i32, i32) {
    %0 = arith.index_cast %arg0 : i32 to index
    %1 = memref.load %arg2[%0] : memref<1xi32, #tpu.memory_space<smem>>
    %c0_i32 = arith.constant 0 : i32
    %c0_i32_0 = arith.constant 0 : i32
    return %1, %c0_i32 : i32, i32
  }
  func.func @transform_3(%arg0: i32, %arg1: memref<1xi32, #tpu.memory_space<smem>>, %arg2: memref<1xi32, #tpu.memory_space<smem>>) -> (i32, i32) {
    %0 = arith.index_cast %arg0 : i32 to index
    %1 = memref.load %arg1[%0] : memref<1xi32, #tpu.memory_space<smem>>
    %c0_i32 = arith.constant 0 : i32
    %c0_i32_0 = arith.constant 0 : i32
    return %1, %c0_i32 : i32, i32
  }
  func.func @transform_4(%arg0: i32, %arg1: memref<1xi32, #tpu.memory_space<smem>>, %arg2: memref<1xi32, #tpu.memory_space<smem>>) -> (i32, i32) {
    %0 = arith.index_cast %arg0 : i32 to index
    %1 = memref.load %arg2[%0] : memref<1xi32, #tpu.memory_space<smem>>
    %c0_i32 = arith.constant 0 : i32
    %c0_i32_0 = arith.constant 0 : i32
    return %c0_i32, %1 : i32, i32
  }
  func.func @transform_5(%arg0: i32, %arg1: memref<1xi32, #tpu.memory_space<smem>>, %arg2: memref<1xi32, #tpu.memory_space<smem>>) -> (i32, i32) {
    %0 = arith.index_cast %arg0 : i32 to index
    %1 = memref.load %arg1[%0] : memref<1xi32, #tpu.memory_space<smem>>
    %c0_i32 = arith.constant 0 : i32
    %c0_i32_0 = arith.constant 0 : i32
    return %1, %c0_i32 : i32, i32
  }
  func.func @transform_6(%arg0: i32, %arg1: memref<1xi32, #tpu.memory_space<smem>>, %arg2: memref<1xi32, #tpu.memory_space<smem>>) -> (i32, i32) {
    %0 = arith.index_cast %arg0 : i32 to index
    %1 = memref.load %arg2[%0] : memref<1xi32, #tpu.memory_space<smem>>
    %c0_i32 = arith.constant 0 : i32
    %c0_i32_0 = arith.constant 0 : i32
    return %1, %c0_i32 : i32, i32
  }
  func.func @transform_7(%arg0: i32, %arg1: memref<1xi32, #tpu.memory_space<smem>>, %arg2: memref<1xi32, #tpu.memory_space<smem>>) -> (i32, i32, i32) {
    %c0_i32 = arith.constant 0 : i32
    %c0_i32_0 = arith.constant 0 : i32
    %c0_i32_1 = arith.constant 0 : i32
    return %arg0, %c0_i32, %c0_i32_0 : i32, i32, i32
  }
}

</mosaic_0001>

<llo_original>
// kernel: tpu_custom_call.1
$region0: #{tpu_custom_call.1}
  #allocation0 [shape = 'u32[]', space=smem, size = 0x4, offset = 0x4, fixed_abs, tag = 'smem constant byte address 0x4 - core index']
  #allocation1 [shape = 'u32[144,128]{1,0:T(1,128)}', space=vmem, size = 0x12000, scoped, tag = 'internal scratch']
  #allocation2 [shape = 's32[1]{0}', space=sflag, size = 0x4, scoped, tag = 'scoped memory for tpu_custom_call.1']
  #allocation3 [shape = 's32[1]{0:T(128)S(6)}', space=smem, size = 0x200, scoped, tag = 'prefetched SMEM operand 0']
  #allocation4 [shape = 's32[1]{0:T(128)S(6)}', space=smem, size = 0x200, scoped, tag = 'prefetched SMEM operand 1']
  %s0 = inlined_call_operand.<no memory space> [shape: s32[1], index: 0, kind: input, shape index: {}]
  %s1 = inlined_call_operand.<no memory space> [shape: s32[1], index: 1, kind: input, shape index: {}]
  %s2 = inlined_call_operand.vmem [shape: f32[5], index: 2, kind: input, shape index: {}]
  %s3 = inlined_call_operand.vmem [shape: f32[16,32], index: 3, kind: input, shape index: {}]
  %s4 = inlined_call_operand.vmem [shape: f32[16,32], index: 4, kind: input, shape index: {}]
  %s5 = inlined_call_operand.vmem [shape: f32[16,1], index: 5, kind: input, shape index: {}]
  %s6 = inlined_call_operand.vmem [shape: f32[1,16], index: 6, kind: input, shape index: {}]
  %s7 = inlined_call_operand.vmem [shape: f32[16,1], index: 7, kind: input, shape index: {}]
  %s8 = inlined_call_operand.vmem [shape: f32[16,1], index: 8, kind: input, shape index: {}]
  %s9 = inlined_call_operand.hbm [shape: f32[1,1,1], index: 9, kind: output, shape index: {}]
  %s10 = sld [smem:[#allocation0]]
  $region42: #{tpu_custom_call.1} parent=0
    _
  %s12 = ssub.s32 1, %s10
  %s13 = scalar_select 0, %s12, %s10
  %14 = sst [smem:[#allocation3]] %s0
  %15 = sst [smem:[#allocation4]] %s1
  $region1: #{tpu_custom_call.1} parent=0
    #allocation5 [shape = 'u8[512]{0}', space=smem, size = 0x200, scoped, tag = 'input window, operand 2, single buffered']
    #allocation6 [shape = 's32[1]{0}', space=sflag, size = 0x4, scoped, tag = 'scoped memory for tpu_custom_call.1']
    #allocation7 [shape = 's32[1]{0}', space=sflag, size = 0x4, scoped, tag = 'scoped memory for tpu_custom_call.1']
    #allocation8 [shape = 'u8[512]{0}', space=vmem, size = 0x400, scoped, tag = 'output window, operand 0, single buffered']
    %16 = vsyncpa [#allocation7], 0
    %17 = vsyncpa [#allocation6], 0
    // Predicated region
    $region2: #{tpu_custom_call.1} parent=1 // pred_check
      _
    $region3: #{tpu_custom_call.1} parent=1 // pred_check_branch
      %19 = sbr.rel (0) target = $region5
    $region4: #{tpu_custom_call.1} parent=1 // pred_region
      %s21 = ssub.s32 16, 16
      %22 = vsyncadd [#allocation7], %s21
      %s24 = sshll.u32 %s2, 4
      %s25 = int_to_ptr.vmem [resolvable:$true] %s24
      %27 = dma.vmem_to_smem %s25, 16, [#allocation5], [#allocation7]
    $region5: #{tpu_custom_call.1} parent=1 // pred_fallthru
      _
    // Predicated region
    $region6: #{tpu_custom_call.1} parent=1 // pred_check
      _
    $region7: #{tpu_custom_call.1} parent=1 // pred_check_branch
      %29 = sbr.rel (0) target = $region9
    $region8: #{tpu_custom_call.1} parent=1 // pred_region
      %s30 = sld [smem:[#allocation3]]
      %s31 = smul.u32 2, %s30
      %p32 = scmp.lt.s32.totalorder %s31, 1
      %s33 = scalar_select %p32, %s31, 1
      %s34 = smul.addr %s33, 8
      %s35 = scalar_lea.vmem %s3, %s34
      %s36 = sld [smem:[#allocation3]]
      %s37 = smul.u32 2, %s36
    $region9: #{tpu_custom_call.1} parent=1 // pred_fallthru
      _
    // Predicated region
    $region10: #{tpu_custom_call.1} parent=1 // pred_check
      _
    $region11: #{tpu_custom_call.1} parent=1 // pred_check_branch
      %39 = sbr.rel (0) target = $region13
    $region12: #{tpu_custom_call.1} parent=1 // pred_region
      %s40 = sld [smem:[#allocation4]]
      %s41 = smul.u32 2, %s40
      %p42 = scmp.lt.s32.totalorder %s41, 1
      %s43 = scalar_select %p42, %s41, 1
      %s44 = smul.addr %s43, 8
      %s45 = scalar_lea.vmem %s4, %s44
      %s46 = sld [smem:[#allocation4]]
      %s47 = smul.u32 2, %s46
    $region13: #{tpu_custom_call.1} parent=1 // pred_fallthru
      _
    // Predicated region
    $region14: #{tpu_custom_call.1} parent=1 // pred_check
      _
    $region15: #{tpu_custom_call.1} parent=1 // pred_check_branch
      %49 = sbr.rel (0) target = $region17
    $region16: #{tpu_custom_call.1} parent=1 // pred_region
      %s50 = sld [smem:[#allocation3]]
      %s51 = smul.u32 2, %s50
      %p52 = scmp.lt.s32.totalorder %s51, 1
      %s53 = scalar_select %p52, %s51, 1
      %s54 = smul.addr %s53, 8
      %s55 = scalar_lea.vmem %s5, %s54
      %s56 = sld [smem:[#allocation3]]
      %s57 = smul.u32 2, %s56
    $region17: #{tpu_custom_call.1} parent=1 // pred_fallthru
      _
    // Predicated region
    $region18: #{tpu_custom_call.1} parent=1 // pred_check
      _
    $region19: #{tpu_custom_call.1} parent=1 // pred_check_branch
      %59 = sbr.rel (0) target = $region21
    $region20: #{tpu_custom_call.1} parent=1 // pred_region
      %s60 = sld [smem:[#allocation4]]
      %p61 = scmp.lt.s32.totalorder %s60, 0
      %s62 = scalar_select %p61, %s60, 0
      %s63 = scalar_lea.vmem %s6, %s62
      %s64 = sld [smem:[#allocation4]]
    $region21: #{tpu_custom_call.1} parent=1 // pred_fallthru
      _
    // Predicated region
    $region22: #{tpu_custom_call.1} parent=1 // pred_check
      _
    $region23: #{tpu_custom_call.1} parent=1 // pred_check_branch
      %66 = sbr.rel (0) target = $region25
    $region24: #{tpu_custom_call.1} parent=1 // pred_region
      %s67 = sld [smem:[#allocation3]]
      %s68 = smul.u32 2, %s67
      %p69 = scmp.lt.s32.totalorder %s68, 1
      %s70 = scalar_select %p69, %s68, 1
      %s71 = smul.addr %s70, 8
      %s72 = scalar_lea.vmem %s7, %s71
      %s73 = sld [smem:[#allocation3]]
      %s74 = smul.u32 2, %s73
    $region25: #{tpu_custom_call.1} parent=1 // pred_fallthru
      _
    // Predicated region
    $region26: #{tpu_custom_call.1} parent=1 // pred_check
      _
    $region27: #{tpu_custom_call.1} parent=1 // pred_check_branch
      %76 = sbr.rel (0) target = $region29
    $region28: #{tpu_custom_call.1} parent=1 // pred_region
      %s77 = sld [smem:[#allocation4]]
      %s78 = smul.u32 2, %s77
      %p79 = scmp.lt.s32.totalorder %s78, 1
      %s80 = scalar_select %p79, %s78, 1
      %s81 = smul.addr %s80, 8
      %s82 = scalar_lea.vmem %s8, %s81
      %s83 = sld [smem:[#allocation4]]
      %s84 = smul.u32 2, %s83
    $region29: #{tpu_custom_call.1} parent=1 // pred_fallthru
      _
    // Predicated region
    $region30: #{tpu_custom_call.1} parent=1 // pred_check
      _
    $region31: #{tpu_custom_call.1} parent=1 // pred_check_branch
      %86 = sbr.rel (0) target = $region33
    $region32: #{tpu_custom_call.1} parent=1 // pred_region
      %87 = dma.done [#allocation7], 16
    $region33: #{tpu_custom_call.1} parent=1 // pred_fallthru
      _
    %88 = sfence
    %s89 = sld [smem:[#allocation3]]
    %s90 = smul.u32 2, %s89
    %p91 = scmp.lt.s32.totalorder %s90, 1
    %s92 = scalar_select %p91, %s90, 1
    %s93 = smul.addr %s92, 8
    %s94 = scalar_lea.vmem %s3, %s93
    %s95 = sld [smem:[#allocation4]]
    %s96 = smul.u32 2, %s95
    %p97 = scmp.lt.s32.totalorder %s96, 1
    %s98 = scalar_select %p97, %s96, 1
    %s99 = smul.addr %s98, 8
    %s100 = scalar_lea.vmem %s4, %s99
    %s101 = sld [smem:[#allocation3]]
    %s102 = smul.u32 2, %s101
    %p103 = scmp.lt.s32.totalorder %s102, 1
    %s104 = scalar_select %p103, %s102, 1
    %s105 = smul.addr %s104, 8
    %s106 = scalar_lea.vmem %s5, %s105
    %s107 = sld [smem:[#allocation4]]
    %p108 = scmp.lt.s32.totalorder %s107, 0
    %s109 = scalar_select %p108, %s107, 0
    %s110 = scalar_lea.vmem %s6, %s109
    %s111 = sld [smem:[#allocation3]]
    %s112 = smul.u32 2, %s111
    %p113 = scmp.lt.s32.totalorder %s112, 1
    %s114 = scalar_select %p113, %s112, 1
    %s115 = smul.addr %s114, 8
    %s116 = scalar_lea.vmem %s7, %s115
    %s117 = sld [smem:[#allocation4]]
    %s118 = smul.u32 2, %s117
    %p119 = scmp.lt.s32.totalorder %s118, 1
    %s120 = scalar_select %p119, %s118, 1
    %s121 = smul.addr %s120, 8
    %s122 = scalar_lea.vmem %s8, %s121
    %s123 = sld [smem:[#allocation3]]
    %s124 = smul.u32 2, %s123
    %p125 = scmp.lt.s32.totalorder %s124, 1
    %s126 = scalar_select %p125, %s124, 1
    %s127 = smul.addr %s126, 8
    %s128 = scalar_lea.vmem %s3, %s127
    %s129 = sld [smem:[#allocation3]]
    %s130 = smul.u32 2, %s129
    %s131 = sld [smem:[#allocation4]]
    %s132 = smul.u32 2, %s131
    %p133 = scmp.lt.s32.totalorder %s132, 1
    %s134 = scalar_select %p133, %s132, 1
    %s135 = smul.addr %s134, 8
    %s136 = scalar_lea.vmem %s4, %s135
    %s137 = sld [smem:[#allocation4]]
    %s138 = smul.u32 2, %s137
    %s139 = sld [smem:[#allocation3]]
    %s140 = smul.u32 2, %s139
    %p141 = scmp.lt.s32.totalorder %s140, 1
    %s142 = scalar_select %p141, %s140, 1
    %s143 = smul.addr %s142, 8
    %s144 = scalar_lea.vmem %s5, %s143
    %s145 = sld [smem:[#allocation3]]
    %s146 = smul.u32 2, %s145
    %s147 = sld [smem:[#allocation4]]
    %p148 = scmp.lt.s32.totalorder %s147, 0
    %s149 = scalar_select %p148, %s147, 0
    %s150 = scalar_lea.vmem %s6, %s149
    %s151 = sld [smem:[#allocation4]]
    %s152 = sld [smem:[#allocation3]]
    %s153 = smul.u32 2, %s152
    %p154 = scmp.lt.s32.totalorder %s153, 1
    %s155 = scalar_select %p154, %s153, 1
    %s156 = smul.addr %s155, 8
    %s157 = scalar_lea.vmem %s7, %s156
    %s158 = sld [smem:[#allocation3]]
    %s159 = smul.u32 2, %s158
    %s160 = sld [smem:[#allocation4]]
    %s161 = smul.u32 2, %s160
    %p162 = scmp.lt.s32.totalorder %s161, 1
    %s163 = scalar_select %p162, %s161, 1
    %s164 = smul.addr %s163, 8
    %s165 = scalar_lea.vmem %s8, %s164
    %s166 = sld [smem:[#allocation4]]
    %s167 = smul.u32 2, %s166
    %s168 = sld [smem:[#allocation3]]
    %s169 = sld [smem:[#allocation4]]
    %v170 = vld [vmem:[%s128] sm:$0xff]
    %v171 = vld [vmem:[%s128 + $0x8] sm:$0xff]
    %v172 = vld [vmem:[%s136] sm:$0xff]
    %v173 = vld [vmem:[%s136 + $0x8] sm:$0xff]
    %vm174 = vcmask 261120
    %v176 = vsel %vm174, %v170, 0
    %v179 = vsel %vm174, %v171, 0
    %v182 = vsel %vm174, %v172, 0
    %v185 = vsel %vm174, %v173, 0
    %187 = vmatprep.subr.mxu0 0.0
    %v188 = vand.u32 %v182, 4294901760
    %189 = vmatpush1.xpose.msra.mxu0 %v188
    %190 = vmatprep.subr.mxu0 0.0
    %v191 = vand.u32 %v185, 4294901760
    %192 = vmatpush1.xpose.msra.mxu0 %v191
    %193 = vmatprep.subr.mxu0 0.0
    %194 = vmatpush1.xpose.msra.mxu0 0.0
    %195 = vmatprep.subr.mxu0 0.0
    %196 = vmatpush1.xpose.msra.mxu0 0.0
    %197 = vmatprep.subr.mxu0 0.0
    %198 = vmatpush1.xpose.msra.mxu0 0.0
    %199 = vmatprep.subr.mxu0 0.0
    %200 = vmatpush1.xpose.msra.mxu0 0.0
    %201 = vmatprep.subr.mxu0 0.0
    %202 = vmatpush1.xpose.msra.mxu0 0.0
    %203 = vmatprep.subr.mxu0 0.0
    %204 = vmatpush1.xpose.msra.mxu0 0.0
    %205 = vmatprep.subr.mxu0 0.0
    %206 = vmatpush1.xpose.msra.mxu0 0.0
    %207 = vmatprep.subr.mxu0 0.0
    %208 = vmatpush1.xpose.msra.mxu0 0.0
    %209 = vmatprep.subr.mxu0 0.0
    %210 = vmatpush1.xpose.msra.mxu0 0.0
    %211 = vmatprep.subr.mxu0 0.0
    %212 = vmatpush1.xpose.msra.mxu0 0.0
    %213 = vmatprep.subr.mxu0 0.0
    %214 = vmatpush1.xpose.msra.mxu0 0.0
    %215 = vmatprep.subr.mxu0 0.0
    %216 = vmatpush1.xpose.msra.mxu0 0.0
    %217 = vmatprep.subr.mxu0 0.0
    %218 = vmatpush1.xpose.msra.mxu0 0.0
    %219 = vmatprep.subr.mxu0 0.0
    %220 = vmatpush1.xpose.msra.mxu0 0.0
    %221 = vmatprep.subr.mxu0 0.0
    %222 = vmatpush1.xpose.msra.mxu0 0.0
    %223 = vmatprep.subr.mxu0 0.0
    %224 = vmatpush1.xpose.msra.mxu0 0.0
    %225 = vmatprep.subr.mxu0 0.0
    %226 = vmatpush1.xpose.msra.mxu0 0.0
    %227 = vmatprep.subr.mxu0 0.0
    %228 = vmatpush1.xpose.msra.mxu0 0.0
    %229 = vmatprep.subr.mxu0 0.0
    %230 = vmatpush1.xpose.msra.mxu0 0.0
    %231 = vmatprep.subr.mxu0 0.0
    %232 = vmatpush1.xpose.msra.mxu0 0.0
    %233 = vmatprep.subr.mxu0 0.0
    %234 = vmatpush1.xpose.msra.mxu0 0.0
    %235 = vmatprep.subr.mxu0 0.0
    %236 = vmatpush1.xpose.msra.mxu0 0.0
    %237 = vmatprep.subr.mxu0 0.0
    %238 = vmatpush1.xpose.msra.mxu0 0.0
    %239 = vmatprep.subr.mxu0 0.0
    %240 = vmatpush1.xpose.msra.mxu0 0.0
    %241 = vmatprep.subr.mxu0 0.0
    %242 = vmatpush1.xpose.msra.mxu0 0.0
    %243 = vmatprep.subr.mxu0 0.0
    %244 = vmatpush1.xpose.msra.mxu0 0.0
    %245 = vmatprep.subr.mxu0 0.0
    %246 = vmatpush1.xpose.msra.mxu0 0.0
    %247 = vmatprep.subr.mxu0 0.0
    %248 = vmatpush1.xpose.msra.mxu0 0.0
    %249 = vmatprep.subr.mxu0 0.0
    %250 = vmatpush1.xpose.msra.mxu0 0.0
    %251 = vmatprep.subr.mxu0 0.0
    %252 = vmatpush1.xpose.msra.mxu0 0.0
    %253 = vmatprep.mubr.f32.mxu0 0.0
    %v254 = vand.u32 %v176, 4294901760
    %v255 = vsub.f32 %v176, %v254
    %v256 = vand.u32 %v255, 4294901760
    %v257 = vsub.f32 %v255, %v256
    %v258 = vand.u32 %v257, 4294901760
    %259 = vmatmul.mubr.f32.gmra.mrb[0].mxu0 %v258
    %v260 = vpop.f32.mrb[0].mxu0
    %v261 = vadd.f32 0.0, %v260
    %v262 = vpop.f32.mrb[0].mxu0
    %263 = vmatprep.mubr.f32.mxu0 0.0
    %v264 = vand.u32 %v179, 4294901760
    %v265 = vsub.f32 %v179, %v264
    %v266 = vand.u32 %v265, 4294901760
    %v267 = vsub.f32 %v265, %v266
    %v268 = vand.u32 %v267, 4294901760
    %269 = vmatmul.mubr.f32.gmra.mrb[0].mxu0 %v268
    %v270 = vpop.f32.mrb[0].mxu0
    %v271 = vadd.f32 0.0, %v270
    %v272 = vpop.f32.mrb[0].mxu0
    %273 = vdwg.mxu0
    %274 = vmatprep.subr.mxu0 0.0
    %v275 = vand.u32 %v182, 4294901760
    %v276 = vsub.f32 %v182, %v275
    %v277 = vand.u32 %v276, 4294901760
    %v278 = vsub.f32 %v276, %v277
    %v279 = vand.u32 %v278, 4294901760
    %280 = vmatpush1.xpose.msra.mxu0 %v279
    %281 = vmatprep.subr.mxu0 0.0
    %v282 = vand.u32 %v185, 4294901760
    %v283 = vsub.f32 %v185, %v282
    %v284 = vand.u32 %v283, 4294901760
    %v285 = vsub.f32 %v283, %v284
    %v286 = vand.u32 %v285, 4294901760
    %287 = vmatpush1.xpose.msra.mxu0 %v286
    %288 = vmatprep.subr.mxu0 0.0
    %289 = vmatpush1.xpose.msra.mxu0 0.0
    %290 = vmatprep.subr.mxu0 0.0
    %291 = vmatpush1.xpose.msra.mxu0 0.0
    %292 = vmatprep.subr.mxu0 0.0
    %293 = vmatpush1.xpose.msra.mxu0 0.0
    %294 = vmatprep.subr.mxu0 0.0
    %295 = vmatpush1.xpose.msra.mxu0 0.0
    %296 = vmatprep.subr.mxu0 0.0
    %297 = vmatpush1.xpose.msra.mxu0 0.0
    %298 = vmatprep.subr.mxu0 0.0
    %299 = vmatpush1.xpose.msra.mxu0 0.0
    %300 = vmatprep.subr.mxu0 0.0
    %301 = vmatpush1.xpose.msra.mxu0 0.0
    %302 = vmatprep.subr.mxu0 0.0
    %303 = vmatpush1.xpose.msra.mxu0 0.0
    %304 = vmatprep.subr.mxu0 0.0
    %305 = vmatpush1.xpose.msra.mxu0 0.0
    %306 = vmatprep.subr.mxu0 0.0
    %307 = vmatpush1.xpose.msra.mxu0 0.0
    %308 = vmatprep.subr.mxu0 0.0
    %309 = vmatpush1.xpose.msra.mxu0 0.0
    %310 = vmatprep.subr.mxu0 0.0
    %311 = vmatpush1.xpose.msra.mxu0 0.0
    %312 = vmatprep.subr.mxu0 0.0
    %313 = vmatpush1.xpose.msra.mxu0 0.0
    %314 = vmatprep.subr.mxu0 0.0
    %315 = vmatpush1.xpose.msra.mxu0 0.0
    %316 = vmatprep.subr.mxu0 0.0
    %317 = vmatpush1.xpose.msra.mxu0 0.0
    %318 = vmatprep.subr.mxu0 0.0
    %319 = vmatpush1.xpose.msra.mxu0 0.0
    %320 = vmatprep.subr.mxu0 0.0
    %321 = vmatpush1.xpose.msra.mxu0 0.0
    %322 = vmatprep.subr.mxu0 0.0
    %323 = vmatpush1.xpose.msra.mxu0 0.0
    %324 = vmatprep.subr.mxu0 0.0
    %325 = vmatpush1.xpose.msra.mxu0 0.0
    %326 = vmatprep.subr.mxu0 0.0
    %327 = vmatpush1.xpose.msra.mxu0 0.0
    %328 = vmatprep.subr.mxu0 0.0
    %329 = vmatpush1.xpose.msra.mxu0 0.0
    %330 = vmatprep.subr.mxu0 0.0
    %331 = vmatpush1.xpose.msra.mxu0 0.0
    %332 = vmatprep.subr.mxu0 0.0
    %333 = vmatpush1.xpose.msra.mxu0 0.0
    %334 = vmatprep.subr.mxu0 0.0
    %335 = vmatpush1.xpose.msra.mxu0 0.0
    %336 = vmatprep.subr.mxu0 0.0
    %337 = vmatpush1.xpose.msra.mxu0 0.0
    %338 = vmatprep.subr.mxu0 0.0
    %339 = vmatpush1.xpose.msra.mxu0 0.0
    %340 = vmatprep.subr.mxu0 0.0
    %341 = vmatpush1.xpose.msra.mxu0 0.0
    %342 = vmatprep.subr.mxu0 0.0
    %343 = vmatpush1.xpose.msra.mxu0 0.0
    %344 = vmatprep.subr.mxu0 0.0
    %345 = vmatpush1.xpose.msra.mxu0 0.0
    %346 = vmatprep.subr.mxu0 0.0
    %347 = vmatpush1.xpose.msra.mxu0 0.0
    %348 = vmatprep.mubr.f32.mxu0 0.0
    %v349 = vand.u32 %v176, 4294901760
    %350 = vmatmul.mubr.f32.gmra.mrb[0].mxu0 %v349
    %v351 = vpop.f32.mrb[0].mxu0
    %v352 = vadd.f32 %v261, %v351
    %v353 = vpop.f32.mrb[0].mxu0
    %354 = vmatprep.mubr.f32.mxu0 0.0
    %v355 = vand.u32 %v179, 4294901760
    %356 = vmatmul.mubr.f32.gmra.mrb[0].mxu0 %v355
    %v357 = vpop.f32.mrb[0].mxu0
    %v358 = vadd.f32 %v271, %v357
    %v359 = vpop.f32.mrb[0].mxu0
    %360 = vdwg.mxu0
    %361 = vmatprep.subr.mxu0 0.0
    %v362 = vand.u32 %v182, 4294901760
    %v363 = vsub.f32 %v182, %v362
    %364 = vmatpush1.xpose.msra.mxu0 %v363
    %365 = vmatprep.subr.mxu0 0.0
    %v366 = vand.u32 %v185, 4294901760
    %v367 = vsub.f32 %v185, %v366
    %368 = vmatpush1.xpose.msra.mxu0 %v367
    %369 = vmatprep.subr.mxu0 0.0
    %370 = vmatpush1.xpose.msra.mxu0 0.0
    %371 = vmatprep.subr.mxu0 0.0
    %372 = vmatpush1.xpose.msra.mxu0 0.0
    %373 = vmatprep.subr.mxu0 0.0
    %374 = vmatpush1.xpose.msra.mxu0 0.0
    %375 = vmatprep.subr.mxu0 0.0
    %376 = vmatpush1.xpose.msra.mxu0 0.0
    %377 = vmatprep.subr.mxu0 0.0
    %378 = vmatpush1.xpose.msra.mxu0 0.0
    %379 = vmatprep.subr.mxu0 0.0
    %380 = vmatpush1.xpose.msra.mxu0 0.0
    %381 = vmatprep.subr.mxu0 0.0
    %382 = vmatpush1.xpose.msra.mxu0 0.0
    %383 = vmatprep.subr.mxu0 0.0
    %384 = vmatpush1.xpose.msra.mxu0 0.0
    %385 = vmatprep.subr.mxu0 0.0
    %386 = vmatpush1.xpose.msra.mxu0 0.0
    %387 = vmatprep.subr.mxu0 0.0
    %388 = vmatpush1.xpose.msra.mxu0 0.0
    %389 = vmatprep.subr.mxu0 0.0
    %390 = vmatpush1.xpose.msra.mxu0 0.0
    %391 = vmatprep.subr.mxu0 0.0
    %392 = vmatpush1.xpose.msra.mxu0 0.0
    %393 = vmatprep.subr.mxu0 0.0
    %394 = vmatpush1.xpose.msra.mxu0 0.0
    %395 = vmatprep.subr.mxu0 0.0
    %396 = vmatpush1.xpose.msra.mxu0 0.0
    %397 = vmatprep.subr.mxu0 0.0
    %398 = vmatpush1.xpose.msra.mxu0 0.0
    %399 = vmatprep.subr.mxu0 0.0
    %400 = vmatpush1.xpose.msra.mxu0 0.0
    %401 = vmatprep.subr.mxu0 0.0
    %402 = vmatpush1.xpose.msra.mxu0 0.0
    %403 = vmatprep.subr.mxu0 0.0
    %404 = vmatpush1.xpose.msra.mxu0 0.0
    %405 = vmatprep.subr.mxu0 0.0
    %406 = vmatpush1.xpose.msra.mxu0 0.0
    %407 = vmatprep.subr.mxu0 0.0
    %408 = vmatpush1.xpose.msra.mxu0 0.0
    %409 = vmatprep.subr.mxu0 0.0
    %410 = vmatpush1.xpose.msra.mxu0 0.0
    %411 = vmatprep.subr.mxu0 0.0
    %412 = vmatpush1.xpose.msra.mxu0 0.0
    %413 = vmatprep.subr.mxu0 0.0
    %414 = vmatpush1.xpose.msra.mxu0 0.0
    %415 = vmatprep.subr.mxu0 0.0
    %416 = vmatpush1.xpose.msra.mxu0 0.0
    %417 = vmatprep.subr.mxu0 0.0
    %418 = vmatpush1.xpose.msra.mxu0 0.0
    %419 = vmatprep.subr.mxu0 0.0
    %420 = vmatpush1.xpose.msra.mxu0 0.0
    %421 = vmatprep.subr.mxu0 0.0
    %422 = vmatpush1.xpose.msra.mxu0 0.0
    %423 = vmatprep.subr.mxu0 0.0
    %424 = vmatpush1.xpose.msra.mxu0 0.0
    %425 = vmatprep.subr.mxu0 0.0
    %426 = vmatpush1.xpose.msra.mxu0 0.0
    %427 = vmatprep.subr.mxu0 0.0
    %428 = vmatpush1.xpose.msra.mxu0 0.0
    %429 = vmatprep.mubr.f32.mxu0 0.0
    %v430 = vand.u32 %v176, 4294901760
    %v431 = vsub.f32 %v176, %v430
    %432 = vmatmul.mubr.f32.gmra.mrb[0].mxu0 %v431
    %v433 = vpop.f32.mrb[0].mxu0
    %v434 = vadd.f32 %v352, %v433
    %v435 = vpop.f32.mrb[0].mxu0
    %436 = vmatprep.mubr.f32.mxu0 0.0
    %v437 = vand.u32 %v179, 4294901760
    %v438 = vsub.f32 %v179, %v437
    %439 = vmatmul.mubr.f32.gmra.mrb[0].mxu0 %v438
    %v440 = vpop.f32.mrb[0].mxu0
    %v441 = vadd.f32 %v358, %v440
    %v442 = vpop.f32.mrb[0].mxu0
    %443 = vdwg.mxu0
    %444 = vmatprep.subr.mxu0 0.0
    %v445 = vand.u32 %v182, 4294901760
    %446 = vmatpush1.xpose.msra.mxu0 %v445
    %447 = vmatprep.subr.mxu0 0.0
    %v448 = vand.u32 %v185, 4294901760
    %449 = vmatpush1.xpose.msra.mxu0 %v448
    %450 = vmatprep.subr.mxu0 0.0
    %451 = vmatpush1.xpose.msra.mxu0 0.0
    %452 = vmatprep.subr.mxu0 0.0
    %453 = vmatpush1.xpose.msra.mxu0 0.0
    %454 = vmatprep.subr.mxu0 0.0
    %455 = vmatpush1.xpose.msra.mxu0 0.0
    %456 = vmatprep.subr.mxu0 0.0
    %457 = vmatpush1.xpose.msra.mxu0 0.0
    %458 = vmatprep.subr.mxu0 0.0
    %459 = vmatpush1.xpose.msra.mxu0 0.0
    %460 = vmatprep.subr.mxu0 0.0
    %461 = vmatpush1.xpose.msra.mxu0 0.0
    %462 = vmatprep.subr.mxu0 0.0
    %463 = vmatpush1.xpose.msra.mxu0 0.0
    %464 = vmatprep.subr.mxu0 0.0
    %465 = vmatpush1.xpose.msra.mxu0 0.0
    %466 = vmatprep.subr.mxu0 0.0
    %467 = vmatpush1.xpose.msra.mxu0 0.0
    %468 = vmatprep.subr.mxu0 0.0
    %469 = vmatpush1.xpose.msra.mxu0 0.0
    %470 = vmatprep.subr.mxu0 0.0
    %471 = vmatpush1.xpose.msra.mxu0 0.0
    %472 = vmatprep.subr.mxu0 0.0
    %473 = vmatpush1.xpose.msra.mxu0 0.0
    %474 = vmatprep.subr.mxu0 0.0
    %475 = vmatpush1.xpose.msra.mxu0 0.0
    %476 = vmatprep.subr.mxu0 0.0
    %477 = vmatpush1.xpose.msra.mxu0 0.0
    %478 = vmatprep.subr.mxu0 0.0
    %479 = vmatpush1.xpose.msra.mxu0 0.0
    %480 = vmatprep.subr.mxu0 0.0
    %481 = vmatpush1.xpose.msra.mxu0 0.0
    %482 = vmatprep.subr.mxu0 0.0
    %483 = vmatpush1.xpose.msra.mxu0 0.0
    %484 = vmatprep.subr.mxu0 0.0
    %485 = vmatpush1.xpose.msra.mxu0 0.0
    %486 = vmatprep.subr.mxu0 0.0
    %487 = vmatpush1.xpose.msra.mxu0 0.0
    %488 = vmatprep.subr.mxu0 0.0
    %489 = vmatpush1.xpose.msra.mxu0 0.0
    %490 = vmatprep.subr.mxu0 0.0
    %491 = vmatpush1.xpose.msra.mxu0 0.0
    %492 = vmatprep.subr.mxu0 0.0
    %493 = vmatpush1.xpose.msra.mxu0 0.0
    %494 = vmatprep.subr.mxu0 0.0
    %495 = vmatpush1.xpose.msra.mxu0 0.0
    %496 = vmatprep.subr.mxu0 0.0
    %497 = vmatpush1.xpose.msra.mxu0 0.0
    %498 = vmatprep.subr.mxu0 0.0
    %499 = vmatpush1.xpose.msra.mxu0 0.0
    %500 = vmatprep.subr.mxu0 0.0
    %501 = vmatpush1.xpose.msra.mxu0 0.0
    %502 = vmatprep.subr.mxu0 0.0
    %503 = vmatpush1.xpose.msra.mxu0 0.0
    %504 = vmatprep.subr.mxu0 0.0
    %505 = vmatpush1.xpose.msra.mxu0 0.0
    %506 = vmatprep.subr.mxu0 0.0
    %507 = vmatpush1.xpose.msra.mxu0 0.0
    %508 = vmatprep.subr.mxu0 0.0
    %509 = vmatpush1.xpose.msra.mxu0 0.0
    %510 = vmatprep.mubr.f32.mxu0 0.0
    %v511 = vand.u32 %v176, 4294901760
    %v512 = vsub.f32 %v176, %v511
    %v513 = vand.u32 %v512, 4294901760
    %514 = vmatmul.mubr.f32.gmra.mrb[0].mxu0 %v513
    %v515 = vpop.f32.mrb[0].mxu0
    %v516 = vadd.f32 %v434, %v515
    %v517 = vpop.f32.mrb[0].mxu0
    %518 = vmatprep.mubr.f32.mxu0 0.0
    %v519 = vand.u32 %v179, 4294901760
    %v520 = vsub.f32 %v179, %v519
    %v521 = vand.u32 %v520, 4294901760
    %522 = vmatmul.mubr.f32.gmra.mrb[0].mxu0 %v521
    %v523 = vpop.f32.mrb[0].mxu0
    %v524 = vadd.f32 %v441, %v523
    %v525 = vpop.f32.mrb[0].mxu0
    %526 = vdwg.mxu0
    %527 = vmatprep.subr.mxu0 0.0
    %v528 = vand.u32 %v182, 4294901760
    %v529 = vsub.f32 %v182, %v528
    %v530 = vand.u32 %v529, 4294901760
    %531 = vmatpush1.xpose.msra.mxu0 %v530
    %532 = vmatprep.subr.mxu0 0.0
    %v533 = vand.u32 %v185, 4294901760
    %v534 = vsub.f32 %v185, %v533
    %v535 = vand.u32 %v534, 4294901760
    %536 = vmatpush1.xpose.msra.mxu0 %v535
    %537 = vmatprep.subr.mxu0 0.0
    %538 = vmatpush1.xpose.msra.mxu0 0.0
    %539 = vmatprep.subr.mxu0 0.0
    %540 = vmatpush1.xpose.msra.mxu0 0.0
    %541 = vmatprep.subr.mxu0 0.0
    %542 = vmatpush1.xpose.msra.mxu0 0.0
    %543 = vmatprep.subr.mxu0 0.0
    %544 = vmatpush1.xpose.msra.mxu0 0.0
    %545 = vmatprep.subr.mxu0 0.0
    %546 = vmatpush1.xpose.msra.mxu0 0.0
    %547 = vmatprep.subr.mxu0 0.0
    %548 = vmatpush1.xpose.msra.mxu0 0.0
    %549 = vmatprep.subr.mxu0 0.0
    %550 = vmatpush1.xpose.msra.mxu0 0.0
    %551 = vmatprep.subr.mxu0 0.0
    %552 = vmatpush1.xpose.msra.mxu0 0.0
    %553 = vmatprep.subr.mxu0 0.0
    %554 = vmatpush1.xpose.msra.mxu0 0.0
    %555 = vmatprep.subr.mxu0 0.0
    %556 = vmatpush1.xpose.msra.mxu0 0.0
    %557 = vmatprep.subr.mxu0 0.0
    %558 = vmatpush1.xpose.msra.mxu0 0.0
    %559 = vmatprep.subr.mxu0 0.0
    %560 = vmatpush1.xpose.msra.mxu0 0.0
    %561 = vmatprep.subr.mxu0 0.0
    %562 = vmatpush1.xpose.msra.mxu0 0.0
    %563 = vmatprep.subr.mxu0 0.0
    %564 = vmatpush1.xpose.msra.mxu0 0.0
    %565 = vmatprep.subr.mxu0 0.0
    %566 = vmatpush1.xpose.msra.mxu0 0.0
    %567 = vmatprep.subr.mxu0 0.0
    %568 = vmatpush1.xpose.msra.mxu0 0.0
    %569 = vmatprep.subr.mxu0 0.0
    %570 = vmatpush1.xpose.msra.mxu0 0.0
    %571 = vmatprep.subr.mxu0 0.0
    %572 = vmatpush1.xpose.msra.mxu0 0.0
    %573 = vmatprep.subr.mxu0 0.0
    %574 = vmatpush1.xpose.msra.mxu0 0.0
    %575 = vmatprep.subr.mxu0 0.0
    %576 = vmatpush1.xpose.msra.mxu0 0.0
    %577 = vmatprep.subr.mxu0 0.0
    %578 = vmatpush1.xpose.msra.mxu0 0.0
    %579 = vmatprep.subr.mxu0 0.0
    %580 = vmatpush1.xpose.msra.mxu0 0.0
    %581 = vmatprep.subr.mxu0 0.0
    %582 = vmatpush1.xpose.msra.mxu0 0.0
    %583 = vmatprep.subr.mxu0 0.0
    %584 = vmatpush1.xpose.msra.mxu0 0.0
    %585 = vmatprep.subr.mxu0 0.0
    %586 = vmatpush1.xpose.msra.mxu0 0.0
    %587 = vmatprep.subr.mxu0 0.0
    %588 = vmatpush1.xpose.msra.mxu0 0.0
    %589 = vmatprep.subr.mxu0 0.0
    %590 = vmatpush1.xpose.msra.mxu0 0.0
    %591 = vmatprep.subr.mxu0 0.0
    %592 = vmatpush1.xpose.msra.mxu0 0.0
    %593 = vmatprep.subr.mxu0 0.0
    %594 = vmatpush1.xpose.msra.mxu0 0.0
    %595 = vmatprep.subr.mxu0 0.0
    %596 = vmatpush1.xpose.msra.mxu0 0.0
    %597 = vmatprep.mubr.f32.mxu0 0.0
    %v598 = vand.u32 %v176, 4294901760
    %599 = vmatmul.mubr.f32.gmra.mrb[0].mxu0 %v598
    %v600 = vpop.f32.mrb[0].mxu0
    %v601 = vadd.f32 %v516, %v600
    %v602 = vpop.f32.mrb[0].mxu0
    %603 = vmatprep.mubr.f32.mxu0 0.0
    %v604 = vand.u32 %v179, 4294901760
    %605 = vmatmul.mubr.f32.gmra.mrb[0].mxu0 %v604
    %v606 = vpop.f32.mrb[0].mxu0
    %v607 = vadd.f32 %v524, %v606
    %v608 = vpop.f32.mrb[0].mxu0
    %609 = vdwg.mxu0
    %610 = vmatprep.subr.mxu0 0.0
    %v611 = vand.u32 %v182, 4294901760
    %612 = vmatpush1.xpose.msra.mxu0 %v611
    %613 = vmatprep.subr.mxu0 0.0
    %v614 = vand.u32 %v185, 4294901760
    %615 = vmatpush1.xpose.msra.mxu0 %v614
    %616 = vmatprep.subr.mxu0 0.0
    %617 = vmatpush1.xpose.msra.mxu0 0.0
    %618 = vmatprep.subr.mxu0 0.0
    %619 = vmatpush1.xpose.msra.mxu0 0.0
    %620 = vmatprep.subr.mxu0 0.0
    %621 = vmatpush1.xpose.msra.mxu0 0.0
    %622 = vmatprep.subr.mxu0 0.0
    %623 = vmatpush1.xpose.msra.mxu0 0.0
    %624 = vmatprep.subr.mxu0 0.0
    %625 = vmatpush1.xpose.msra.mxu0 0.0
    %626 = vmatprep.subr.mxu0 0.0
    %627 = vmatpush1.xpose.msra.mxu0 0.0
    %628 = vmatprep.subr.mxu0 0.0
    %629 = vmatpush1.xpose.msra.mxu0 0.0
    %630 = vmatprep.subr.mxu0 0.0
    %631 = vmatpush1.xpose.msra.mxu0 0.0
    %632 = vmatprep.subr.mxu0 0.0
    %633 = vmatpush1.xpose.msra.mxu0 0.0
    %634 = vmatprep.subr.mxu0 0.0
    %635 = vmatpush1.xpose.msra.mxu0 0.0
    %636 = vmatprep.subr.mxu0 0.0
    %637 = vmatpush1.xpose.msra.mxu0 0.0
    %638 = vmatprep.subr.mxu0 0.0
    %639 = vmatpush1.xpose.msra.mxu0 0.0
    %640 = vmatprep.subr.mxu0 0.0
    %641 = vmatpush1.xpose.msra.mxu0 0.0
    %642 = vmatprep.subr.mxu0 0.0
    %643 = vmatpush1.xpose.msra.mxu0 0.0
    %644 = vmatprep.subr.mxu0 0.0
    %645 = vmatpush1.xpose.msra.mxu0 0.0
    %646 = vmatprep.subr.mxu0 0.0
    %647 = vmatpush1.xpose.msra.mxu0 0.0
    %648 = vmatprep.subr.mxu0 0.0
    %649 = vmatpush1.xpose.msra.mxu0 0.0
    %650 = vmatprep.subr.mxu0 0.0
    %651 = vmatpush1.xpose.msra.mxu0 0.0
    %652 = vmatprep.subr.mxu0 0.0
    %653 = vmatpush1.xpose.msra.mxu0 0.0
    %654 = vmatprep.subr.mxu0 0.0
    %655 = vmatpush1.xpose.msra.mxu0 0.0
    %656 = vmatprep.subr.mxu0 0.0
    %657 = vmatpush1.xpose.msra.mxu0 0.0
    %658 = vmatprep.subr.mxu0 0.0
    %659 = vmatpush1.xpose.msra.mxu0 0.0
    %660 = vmatprep.subr.mxu0 0.0
    %661 = vmatpush1.xpose.msra.mxu0 0.0
    %662 = vmatprep.subr.mxu0 0.0
    %663 = vmatpush1.xpose.msra.mxu0 0.0
    %664 = vmatprep.subr.mxu0 0.0
    %665 = vmatpush1.xpose.msra.mxu0 0.0
    %666 = vmatprep.subr.mxu0 0.0
    %667 = vmatpush1.xpose.msra.mxu0 0.0
    %668 = vmatprep.subr.mxu0 0.0
    %669 = vmatpush1.xpose.msra.mxu0 0.0
    %670 = vmatprep.subr.mxu0 0.0
    %671 = vmatpush1.xpose.msra.mxu0 0.0
    %672 = vmatprep.subr.mxu0 0.0
    %673 = vmatpush1.xpose.msra.mxu0 0.0
    %674 = vmatprep.subr.mxu0 0.0
    %675 = vmatpush1.xpose.msra.mxu0 0.0
    %676 = vmatprep.mubr.f32.mxu0 0.0
    %v677 = vand.u32 %v176, 4294901760
    %678 = vmatmul.mubr.f32.gmra.mrb[0].mxu0 %v677
    %v679 = vpop.f32.mrb[0].mxu0
    %v680 = vadd.f32 %v601, %v679
    %v681 = vpop.f32.mrb[0].mxu0
    %682 = vmatprep.mubr.f32.mxu0 0.0
    %v683 = vand.u32 %v179, 4294901760
    %684 = vmatmul.mubr.f32.gmra.mrb[0].mxu0 %v683
    %v685 = vpop.f32.mrb[0].mxu0
    %v686 = vadd.f32 %v607, %v685
    %v687 = vpop.f32.mrb[0].mxu0
    %688 = vdwg.mxu0
    %v689 = vld [vmem:[%s144] sm:$0xff]
    %v690 = vld [vmem:[%s144 + $0x8] sm:$0xff]
    %v691 = vld [vmem:[%s150] sm:$0x1]
    %v692 = vmul.f32 %v680, 2.0
    %v693 = vmul.f32 %v686, 2.0
    %v695 = vlaneseq
    %v696 = vshrl.u32 %v695, 7
    %v697 = vsub.s32 0, %v696
    %v698 = vrot.slane %v691, %v697
    %v700 = vsub.f32 %v698, %v692
    %v701 = vsub.f32 %v698, %v693
    %703 = vset.pattern.permute.xlu0 0
    %704 = vperm.xlu0 %703, %v689
    %v705 = vpop.permute.xlu0 %704
    %708 = vset.pattern.permute.xlu0 0
    %709 = vperm.xlu0 %708, %v690
    %v710 = vpop.permute.xlu0 %709
    %v712 = vadd.f32 %v705, %v700
    %v713 = vadd.f32 %v710, %v701
    %v714 = vmax.f32 %v712, 0.0
    %v715 = vmax.f32 %v713, 0.0
    %s716 = sld [smem:[#allocation5 + $0x4]]
    %v717 = vstv %s716
    %v718 = vmul.f32 %v714, %v717
    %v719 = vmul.f32 %v715, %v717
    %v720 = vmul.f32 %v718, 1.442695
    %v721 = vpow.pop %v720
    %v722 = vmul.f32 %v719, 1.442695
    %v723 = vpow.pop %v722
    %v724 = vmul.f32 %v721, %v721
    %v725 = vmul.f32 %v723, %v723
    %v726 = vadd.f32 %v721, %v724
    %v727 = vadd.f32 %v723, %v725
    %v728 = vmul.f32 %v724, %v724
    %v729 = vmul.f32 %v725, %v725
    %v730 = vadd.f32 %v726, %v728
    %v731 = vadd.f32 %v727, %v729
    %v732 = vmul.f32 %v728, %v728
    %v733 = vmul.f32 %v729, %v729
    %v734 = vadd.f32 %v730, %v732
    %v735 = vadd.f32 %v731, %v733
    %v736 = vmul.f32 %v732, %v732
    %v737 = vmul.f32 %v733, %v733
    %v738 = vadd.f32 %v734, %v736
    %v739 = vadd.f32 %v735, %v737
    %v740 = vld [vmem:[%s165] sm:$0xff]
    %v741 = vld [vmem:[%s165 + $0x8] sm:$0xff]
    %vm742 = vcmask 130048
    %v744 = vsel %vm742, %v738, 0
    %v747 = vsel %vm742, %v739, 0
    %749 = vmatprep.subr.mxu0 0.0
    %v750 = vand.u32 %v740, 4294901760
    %751 = vmatpush1.msra.mxu0 %v750
    %752 = vmatprep.subr.mxu0 0.0
    %v753 = vand.u32 %v741, 4294901760
    %754 = vmatpush1.msra.mxu0 %v753
    %755 = vmatprep.subr.mxu0 0.0
    %756 = vmatpush1.msra.mxu0 0.0
    %757 = vmatprep.subr.mxu0 0.0
    %758 = vmatpush1.msra.mxu0 0.0
    %759 = vmatprep.subr.mxu0 0.0
    %760 = vmatpush1.msra.mxu0 0.0
    %761 = vmatprep.subr.mxu0 0.0
    %762 = vmatpush1.msra.mxu0 0.0
    %763 = vmatprep.subr.mxu0 0.0
    %764 = vmatpush1.msra.mxu0 0.0
    %765 = vmatprep.subr.mxu0 0.0
    %766 = vmatpush1.msra.mxu0 0.0
    %767 = vmatprep.subr.mxu0 0.0
    %768 = vmatpush1.msra.mxu0 0.0
    %769 = vmatprep.subr.mxu0 0.0
    %770 = vmatpush1.msra.mxu0 0.0
    %771 = vmatprep.subr.mxu0 0.0
    %772 = vmatpush1.msra.mxu0 0.0
    %773 = vmatprep.subr.mxu0 0.0
    %774 = vmatpush1.msra.mxu0 0.0
    %775 = vmatprep.subr.mxu0 0.0
    %776 = vmatpush1.msra.mxu0 0.0
    %777 = vmatprep.subr.mxu0 0.0
    %778 = vmatpush1.msra.mxu0 0.0
    %779 = vmatprep.subr.mxu0 0.0
    %780 = vmatpush1.msra.mxu0 0.0
    %781 = vmatprep.subr.mxu0 0.0
    %782 = vmatpush1.msra.mxu0 0.0
    %783 = vmatprep.subr.mxu0 0.0
    %784 = vmatpush1.msra.mxu0 0.0
    %785 = vmatprep.subr.mxu0 0.0
    %786 = vmatpush1.msra.mxu0 0.0
    %787 = vmatprep.subr.mxu0 0.0
    %788 = vmatpush1.msra.mxu0 0.0
    %789 = vmatprep.subr.mxu0 0.0
    %790 = vmatpush1.msra.mxu0 0.0
    %791 = vmatprep.subr.mxu0 0.0
    %792 = vmatpush1.msra.mxu0 0.0
    %793 = vmatprep.subr.mxu0 0.0
    %794 = vmatpush1.msra.mxu0 0.0
    %795 = vmatprep.subr.mxu0 0.0
    %796 = vmatpush1.msra.mxu0 0.0
    %797 = vmatprep.subr.mxu0 0.0
    %798 = vmatpush1.msra.mxu0 0.0
    %799 = vmatprep.subr.mxu0 0.0
    %800 = vmatpush1.msra.mxu0 0.0
    %801 = vmatprep.subr.mxu0 0.0
    %802 = vmatpush1.msra.mxu0 0.0
    %803 = vmatprep.subr.mxu0 0.0
    %804 = vmatpush1.msra.mxu0 0.0
    %805 = vmatprep.subr.mxu0 0.0
    %806 = vmatpush1.msra.mxu0 0.0
    %807 = vmatprep.subr.mxu0 0.0
    %808 = vmatpush1.msra.mxu0 0.0
    %809 = vmatprep.subr.mxu0 0.0
    %810 = vmatpush1.msra.mxu0 0.0
    %811 = vmatprep.subr.mxu0 0.0
    %812 = vmatpush1.msra.mxu0 0.0
    %813 = vmatprep.subr.mxu0 0.0
    %814 = vmatpush1.msra.mxu0 0.0
    %815 = vmatprep.mubr.f32.mxu0 0.0
    %v816 = vand.u32 %v744, 4294901760
    %v817 = vsub.f32 %v744, %v816
    %v818 = vand.u32 %v817, 4294901760
    %v819 = vsub.f32 %v817, %v818
    %v820 = vand.u32 %v819, 4294901760
    %821 = vmatmul.mubr.f32.gmra.mrb[0].mxu0 %v820
    %v822 = vpop.f32.mrb[0].mxu0
    %v823 = vadd.f32 0.0, %v822
    %v824 = vpop.f32.mrb[0].mxu0
    %825 = vmatprep.mubr.f32.mxu0 0.0
    %v826 = vand.u32 %v747, 4294901760
    %v827 = vsub.f32 %v747, %v826
    %v828 = vand.u32 %v827, 4294901760
    %v829 = vsub.f32 %v827, %v828
    %v830 = vand.u32 %v829, 4294901760
    %831 = vmatmul.mubr.f32.gmra.mrb[0].mxu0 %v830
    %v832 = vpop.f32.mrb[0].mxu0
    %v833 = vadd.f32 0.0, %v832
    %v834 = vpop.f32.mrb[0].mxu0
    %835 = vdwg.mxu0
    %836 = vmatprep.subr.mxu0 0.0
    %v837 = vand.u32 %v740, 4294901760
    %v838 = vsub.f32 %v740, %v837
    %v839 = vand.u32 %v838, 4294901760
    %v840 = vsub.f32 %v838, %v839
    %v841 = vand.u32 %v840, 4294901760
    %842 = vmatpush1.msra.mxu0 %v841
    %843 = vmatprep.subr.mxu0 0.0
    %v844 = vand.u32 %v741, 4294901760
    %v845 = vsub.f32 %v741, %v844
    %v846 = vand.u32 %v845, 4294901760
    %v847 = vsub.f32 %v845, %v846
    %v848 = vand.u32 %v847, 4294901760
    %849 = vmatpush1.msra.mxu0 %v848
    %850 = vmatprep.subr.mxu0 0.0
    %851 = vmatpush1.msra.mxu0 0.0
    %852 = vmatprep.subr.mxu0 0.0
    %853 = vmatpush1.msra.mxu0 0.0
    %854 = vmatprep.subr.mxu0 0.0
    %855 = vmatpush1.msra.mxu0 0.0
    %856 = vmatprep.subr.mxu0 0.0
    %857 = vmatpush1.msra.mxu0 0.0
    %858 = vmatprep.subr.mxu0 0.0
    %859 = vmatpush1.msra.mxu0 0.0
    %860 = vmatprep.subr.mxu0 0.0
    %861 = vmatpush1.msra.mxu0 0.0
    %862 = vmatprep.subr.mxu0 0.0
    %863 = vmatpush1.msra.mxu0 0.0
    %864 = vmatprep.subr.mxu0 0.0
    %865 = vmatpush1.msra.mxu0 0.0
    %866 = vmatprep.subr.mxu0 0.0
    %867 = vmatpush1.msra.mxu0 0.0
    %868 = vmatprep.subr.mxu0 0.0
    %869 = vmatpush1.msra.mxu0 0.0
    %870 = vmatprep.subr.mxu0 0.0
    %871 = vmatpush1.msra.mxu0 0.0
    %872 = vmatprep.subr.mxu0 0.0
    %873 = vmatpush1.msra.mxu0 0.0
    %874 = vmatprep.subr.mxu0 0.0
    %875 = vmatpush1.msra.mxu0 0.0
    %876 = vmatprep.subr.mxu0 0.0
    %877 = vmatpush1.msra.mxu0 0.0
    %878 = vmatprep.subr.mxu0 0.0
    %879 = vmatpush1.msra.mxu0 0.0
    %880 = vmatprep.subr.mxu0 0.0
    %881 = vmatpush1.msra.mxu0 0.0
    %882 = vmatprep.subr.mxu0 0.0
    %883 = vmatpush1.msra.mxu0 0.0
    %884 = vmatprep.subr.mxu0 0.0
    %885 = vmatpush1.msra.mxu0 0.0
    %886 = vmatprep.subr.mxu0 0.0
    %887 = vmatpush1.msra.mxu0 0.0
    %888 = vmatprep.subr.mxu0 0.0
    %889 = vmatpush1.msra.mxu0 0.0
    %890 = vmatprep.subr.mxu0 0.0
    %891 = vmatpush1.msra.mxu0 0.0
    %892 = vmatprep.subr.mxu0 0.0
    %893 = vmatpush1.msra.mxu0 0.0
    %894 = vmatprep.subr.mxu0 0.0
    %895 = vmatpush1.msra.mxu0 0.0
    %896 = vmatprep.subr.mxu0 0.0
    %897 = vmatpush1.msra.mxu0 0.0
    %898 = vmatprep.subr.mxu0 0.0
    %899 = vmatpush1.msra.mxu0 0.0
    %900 = vmatprep.subr.mxu0 0.0
    %901 = vmatpush1.msra.mxu0 0.0
    %902 = vmatprep.subr.mxu0 0.0
    %903 = vmatpush1.msra.mxu0 0.0
    %904 = vmatprep.subr.mxu0 0.0
    %905 = vmatpush1.msra.mxu0 0.0
    %906 = vmatprep.subr.mxu0 0.0
    %907 = vmatpush1.msra.mxu0 0.0
    %908 = vmatprep.subr.mxu0 0.0
    %909 = vmatpush1.msra.mxu0 0.0
    %910 = vmatprep.mubr.f32.mxu0 0.0
    %v911 = vand.u32 %v744, 4294901760
    %912 = vmatmul.mubr.f32.gmra.mrb[0].mxu0 %v911
    %v913 = vpop.f32.mrb[0].mxu0
    %v914 = vadd.f32 %v823, %v913
    %v915 = vpop.f32.mrb[0].mxu0
    %916 = vmatprep.mubr.f32.mxu0 0.0
    %v917 = vand.u32 %v747, 4294901760
    %918 = vmatmul.mubr.f32.gmra.mrb[0].mxu0 %v917
    %v919 = vpop.f32.mrb[0].mxu0
    %v920 = vadd.f32 %v833, %v919
    %v921 = vpop.f32.mrb[0].mxu0
    %922 = vdwg.mxu0
    %923 = vmatprep.subr.mxu0 0.0
    %v924 = vand.u32 %v740, 4294901760
    %v925 = vsub.f32 %v740, %v924
    %926 = vmatpush1.msra.mxu0 %v925
    %927 = vmatprep.subr.mxu0 0.0
    %v928 = vand.u32 %v741, 4294901760
    %v929 = vsub.f32 %v741, %v928
    %930 = vmatpush1.msra.mxu0 %v929
    %931 = vmatprep.subr.mxu0 0.0
    %932 = vmatpush1.msra.mxu0 0.0
    %933 = vmatprep.subr.mxu0 0.0
    %934 = vmatpush1.msra.mxu0 0.0
    %935 = vmatprep.subr.mxu0 0.0
    %936 = vmatpush1.msra.mxu0 0.0
    %937 = vmatprep.subr.mxu0 0.0
    %938 = vmatpush1.msra.mxu0 0.0
    %939 = vmatprep.subr.mxu0 0.0
    %940 = vmatpush1.msra.mxu0 0.0
    %941 = vmatprep.subr.mxu0 0.0
    %942 = vmatpush1.msra.mxu0 0.0
    %943 = vmatprep.subr.mxu0 0.0
    %944 = vmatpush1.msra.mxu0 0.0
    %945 = vmatprep.subr.mxu0 0.0
    %946 = vmatpush1.msra.mxu0 0.0
    %947 = vmatprep.subr.mxu0 0.0
    %948 = vmatpush1.msra.mxu0 0.0
    %949 = vmatprep.subr.mxu0 0.0
    %950 = vmatpush1.msra.mxu0 0.0
    %951 = vmatprep.subr.mxu0 0.0
    %952 = vmatpush1.msra.mxu0 0.0
    %953 = vmatprep.subr.mxu0 0.0
    %954 = vmatpush1.msra.mxu0 0.0
    %955 = vmatprep.subr.mxu0 0.0
    %956 = vmatpush1.msra.mxu0 0.0
    %957 = vmatprep.subr.mxu0 0.0
    %958 = vmatpush1.msra.mxu0 0.0
    %959 = vmatprep.subr.mxu0 0.0
    %960 = vmatpush1.msra.mxu0 0.0
    %961 = vmatprep.subr.mxu0 0.0
    %962 = vmatpush1.msra.mxu0 0.0
    %963 = vmatprep.subr.mxu0 0.0
    %964 = vmatpush1.msra.mxu0 0.0
    %965 = vmatprep.subr.mxu0 0.0
    %966 = vmatpush1.msra.mxu0 0.0
    %967 = vmatprep.subr.mxu0 0.0
    %968 = vmatpush1.msra.mxu0 0.0
    %969 = vmatprep.subr.mxu0 0.0
    %970 = vmatpush1.msra.mxu0 0.0
    %971 = vmatprep.subr.mxu0 0.0
    %972 = vmatpush1.msra.mxu0 0.0
    %973 = vmatprep.subr.mxu0 0.0
    %974 = vmatpush1.msra.mxu0 0.0
    %975 = vmatprep.subr.mxu0 0.0
    %976 = vmatpush1.msra.mxu0 0.0
    %977 = vmatprep.subr.mxu0 0.0
    %978 = vmatpush1.msra.mxu0 0.0
    %979 = vmatprep.subr.mxu0 0.0
    %980 = vmatpush1.msra.mxu0 0.0
    %981 = vmatprep.subr.mxu0 0.0
    %982 = vmatpush1.msra.mxu0 0.0
    %983 = vmatprep.subr.mxu0 0.0
    %984 = vmatpush1.msra.mxu0 0.0
    %985 = vmatprep.subr.mxu0 0.0
    %986 = vmatpush1.msra.mxu0 0.0
    %987 = vmatprep.subr.mxu0 0.0
    %988 = vmatpush1.msra.mxu0 0.0
    %989 = vmatprep.subr.mxu0 0.0
    %990 = vmatpush1.msra.mxu0 0.0
    %991 = vmatprep.mubr.f32.mxu0 0.0
    %v992 = vand.u32 %v744, 4294901760
    %v993 = vsub.f32 %v744, %v992
    %994 = vmatmul.mubr.f32.gmra.mrb[0].mxu0 %v993
    %v995 = vpop.f32.mrb[0].mxu0
    %v996 = vadd.f32 %v914, %v995
    %v997 = vpop.f32.mrb[0].mxu0
    %998 = vmatprep.mubr.f32.mxu0 0.0
    %v999 = vand.u32 %v747, 4294901760
    %v1000 = vsub.f32 %v747, %v999
    %1001 = vmatmul.mubr.f32.gmra.mrb[0].mxu0 %v1000
    %v1002 = vpop.f32.mrb[0].mxu0
    %v1003 = vadd.f32 %v920, %v1002
    %v1004 = vpop.f32.mrb[0].mxu0
    %1005 = vdwg.mxu0
    %1006 = vmatprep.subr.mxu0 0.0
    %v1007 = vand.u32 %v740, 4294901760
    %1008 = vmatpush1.msra.mxu0 %v1007
    %1009 = vmatprep.subr.mxu0 0.0
    %v1010 = vand.u32 %v741, 4294901760
    %1011 = vmatpush1.msra.mxu0 %v1010
    %1012 = vmatprep.subr.mxu0 0.0
    %1013 = vmatpush1.msra.mxu0 0.0
    %1014 = vmatprep.subr.mxu0 0.0
    %1015 = vmatpush1.msra.mxu0 0.0
    %1016 = vmatprep.subr.mxu0 0.0
    %1017 = vmatpush1.msra.mxu0 0.0
    %1018 = vmatprep.subr.mxu0 0.0
    %1019 = vmatpush1.msra.mxu0 0.0
    %1020 = vmatprep.subr.mxu0 0.0
    %1021 = vmatpush1.msra.mxu0 0.0
    %1022 = vmatprep.subr.mxu0 0.0
    %1023 = vmatpush1.msra.mxu0 0.0
    %1024 = vmatprep.subr.mxu0 0.0
    %1025 = vmatpush1.msra.mxu0 0.0
    %1026 = vmatprep.subr.mxu0 0.0
    %1027 = vmatpush1.msra.mxu0 0.0
    %1028 = vmatprep.subr.mxu0 0.0
    %1029 = vmatpush1.msra.mxu0 0.0
    %1030 = vmatprep.subr.mxu0 0.0
    %1031 = vmatpush1.msra.mxu0 0.0
    %1032 = vmatprep.subr.mxu0 0.0
    %1033 = vmatpush1.msra.mxu0 0.0
    %1034 = vmatprep.subr.mxu0 0.0
    %1035 = vmatpush1.msra.mxu0 0.0
    %1036 = vmatprep.subr.mxu0 0.0
    %1037 = vmatpush1.msra.mxu0 0.0
    %1038 = vmatprep.subr.mxu0 0.0
    %1039 = vmatpush1.msra.mxu0 0.0
    %1040 = vmatprep.subr.mxu0 0.0
    %1041 = vmatpush1.msra.mxu0 0.0
    %1042 = vmatprep.subr.mxu0 0.0
    %1043 = vmatpush1.msra.mxu0 0.0
    %1044 = vmatprep.subr.mxu0 0.0
    %1045 = vmatpush1.msra.mxu0 0.0
    %1046 = vmatprep.subr.mxu0 0.0
    %1047 = vmatpush1.msra.mxu0 0.0
    %1048 = vmatprep.subr.mxu0 0.0
    %1049 = vmatpush1.msra.mxu0 0.0
    %1050 = vmatprep.subr.mxu0 0.0
    %1051 = vmatpush1.msra.mxu0 0.0
    %1052 = vmatprep.subr.mxu0 0.0
    %1053 = vmatpush1.msra.mxu0 0.0
    %1054 = vmatprep.subr.mxu0 0.0
    %1055 = vmatpush1.msra.mxu0 0.0
    %1056 = vmatprep.subr.mxu0 0.0
    %1057 = vmatpush1.msra.mxu0 0.0
    %1058 = vmatprep.subr.mxu0 0.0
    %1059 = vmatpush1.msra.mxu0 0.0
    %1060 = vmatprep.subr.mxu0 0.0
    %1061 = vmatpush1.msra.mxu0 0.0
    %1062 = vmatprep.subr.mxu0 0.0
    %1063 = vmatpush1.msra.mxu0 0.0
    %1064 = vmatprep.subr.mxu0 0.0
    %1065 = vmatpush1.msra.mxu0 0.0
    %1066 = vmatprep.subr.mxu0 0.0
    %1067 = vmatpush1.msra.mxu0 0.0
    %1068 = vmatprep.subr.mxu0 0.0
    %1069 = vmatpush1.msra.mxu0 0.0
    %1070 = vmatprep.subr.mxu0 0.0
    %1071 = vmatpush1.msra.mxu0 0.0
    %1072 = vmatprep.mubr.f32.mxu0 0.0
    %v1073 = vand.u32 %v744, 4294901760
    %v1074 = vsub.f32 %v744, %v1073
    %v1075 = vand.u32 %v1074, 4294901760
    %1076 = vmatmul.mubr.f32.gmra.mrb[0].mxu0 %v1075
    %v1077 = vpop.f32.mrb[0].mxu0
    %v1078 = vadd.f32 %v996, %v1077
    %v1079 = vpop.f32.mrb[0].mxu0
    %1080 = vmatprep.mubr.f32.mxu0 0.0
    %v1081 = vand.u32 %v747, 4294901760
    %v1082 = vsub.f32 %v747, %v1081
    %v1083 = vand.u32 %v1082, 4294901760
    %1084 = vmatmul.mubr.f32.gmra.mrb[0].mxu0 %v1083
    %v1085 = vpop.f32.mrb[0].mxu0
    %v1086 = vadd.f32 %v1003, %v1085
    %v1087 = vpop.f32.mrb[0].mxu0
    %1088 = vdwg.mxu0
    %1089 = vmatprep.subr.mxu0 0.0
    %v1090 = vand.u32 %v740, 4294901760
    %v1091 = vsub.f32 %v740, %v1090
    %v1092 = vand.u32 %v1091, 4294901760
    %1093 = vmatpush1.msra.mxu0 %v1092
    %1094 = vmatprep.subr.mxu0 0.0
    %v1095 = vand.u32 %v741, 4294901760
    %v1096 = vsub.f32 %v741, %v1095
    %v1097 = vand.u32 %v1096, 4294901760
    %1098 = vmatpush1.msra.mxu0 %v1097
    %1099 = vmatprep.subr.mxu0 0.0
    %1100 = vmatpush1.msra.mxu0 0.0
    %1101 = vmatprep.subr.mxu0 0.0
    %1102 = vmatpush1.msra.mxu0 0.0
    %1103 = vmatprep.subr.mxu0 0.0
    %1104 = vmatpush1.msra.mxu0 0.0
    %1105 = vmatprep.subr.mxu0 0.0
    %1106 = vmatpush1.msra.mxu0 0.0
    %1107 = vmatprep.subr.mxu0 0.0
    %1108 = vmatpush1.msra.mxu0 0.0
    %1109 = vmatprep.subr.mxu0 0.0
    %1110 = vmatpush1.msra.mxu0 0.0
    %1111 = vmatprep.subr.mxu0 0.0
    %1112 = vmatpush1.msra.mxu0 0.0
    %1113 = vmatprep.subr.mxu0 0.0
    %1114 = vmatpush1.msra.mxu0 0.0
    %1115 = vmatprep.subr.mxu0 0.0
    %1116 = vmatpush1.msra.mxu0 0.0
    %1117 = vmatprep.subr.mxu0 0.0
    %1118 = vmatpush1.msra.mxu0 0.0
    %1119 = vmatprep.subr.mxu0 0.0
    %1120 = vmatpush1.msra.mxu0 0.0
    %1121 = vmatprep.subr.mxu0 0.0
    %1122 = vmatpush1.msra.mxu0 0.0
    %1123 = vmatprep.subr.mxu0 0.0
    %1124 = vmatpush1.msra.mxu0 0.0
    %1125 = vmatprep.subr.mxu0 0.0
    %1126 = vmatpush1.msra.mxu0 0.0
    %1127 = vmatprep.subr.mxu0 0.0
    %1128 = vmatpush1.msra.mxu0 0.0
    %1129 = vmatprep.subr.mxu0 0.0
    %1130 = vmatpush1.msra.mxu0 0.0
    %1131 = vmatprep.subr.mxu0 0.0
    %1132 = vmatpush1.msra.mxu0 0.0
    %1133 = vmatprep.subr.mxu0 0.0
    %1134 = vmatpush1.msra.mxu0 0.0
    %1135 = vmatprep.subr.mxu0 0.0
    %1136 = vmatpush1.msra.mxu0 0.0
    %1137 = vmatprep.subr.mxu0 0.0
    %1138 = vmatpush1.msra.mxu0 0.0
    %1139 = vmatprep.subr.mxu0 0.0
    %1140 = vmatpush1.msra.mxu0 0.0
    %1141 = vmatprep.subr.mxu0 0.0
    %1142 = vmatpush1.msra.mxu0 0.0
    %1143 = vmatprep.subr.mxu0 0.0
    %1144 = vmatpush1.msra.mxu0 0.0
    %1145 = vmatprep.subr.mxu0 0.0
    %1146 = vmatpush1.msra.mxu0 0.0
    %1147 = vmatprep.subr.mxu0 0.0
    %1148 = vmatpush1.msra.mxu0 0.0
    %1149 = vmatprep.subr.mxu0 0.0
    %1150 = vmatpush1.msra.mxu0 0.0
    %1151 = vmatprep.subr.mxu0 0.0
    %1152 = vmatpush1.msra.mxu0 0.0
    %1153 = vmatprep.subr.mxu0 0.0
    %1154 = vmatpush1.msra.mxu0 0.0
    %1155 = vmatprep.subr.mxu0 0.0
    %1156 = vmatpush1.msra.mxu0 0.0
    %1157 = vmatprep.subr.mxu0 0.0
    %1158 = vmatpush1.msra.mxu0 0.0
    %1159 = vmatprep.mubr.f32.mxu0 0.0
    %v1160 = vand.u32 %v744, 4294901760
    %1161 = vmatmul.mubr.f32.gmra.mrb[0].mxu0 %v1160
    %v1162 = vpop.f32.mrb[0].mxu0
    %v1163 = vadd.f32 %v1078, %v1162
    %v1164 = vpop.f32.mrb[0].mxu0
    %1165 = vmatprep.mubr.f32.mxu0 0.0
    %v1166 = vand.u32 %v747, 4294901760
    %1167 = vmatmul.mubr.f32.gmra.mrb[0].mxu0 %v1166
    %v1168 = vpop.f32.mrb[0].mxu0
    %v1169 = vadd.f32 %v1086, %v1168
    %v1170 = vpop.f32.mrb[0].mxu0
    %1171 = vdwg.mxu0
    %1172 = vmatprep.subr.mxu0 0.0
    %v1173 = vand.u32 %v740, 4294901760
    %1174 = vmatpush1.msra.mxu0 %v1173
    %1175 = vmatprep.subr.mxu0 0.0
    %v1176 = vand.u32 %v741, 4294901760
    %1177 = vmatpush1.msra.mxu0 %v1176
    %1178 = vmatprep.subr.mxu0 0.0
    %1179 = vmatpush1.msra.mxu0 0.0
    %1180 = vmatprep.subr.mxu0 0.0
    %1181 = vmatpush1.msra.mxu0 0.0
    %1182 = vmatprep.subr.mxu0 0.0
    %1183 = vmatpush1.msra.mxu0 0.0
    %1184 = vmatprep.subr.mxu0 0.0
    %1185 = vmatpush1.msra.mxu0 0.0
    %1186 = vmatprep.subr.mxu0 0.0
    %1187 = vmatpush1.msra.mxu0 0.0
    %1188 = vmatprep.subr.mxu0 0.0
    %1189 = vmatpush1.msra.mxu0 0.0
    %1190 = vmatprep.subr.mxu0 0.0
    %1191 = vmatpush1.msra.mxu0 0.0
    %1192 = vmatprep.subr.mxu0 0.0
    %1193 = vmatpush1.msra.mxu0 0.0
    %1194 = vmatprep.subr.mxu0 0.0
    %1195 = vmatpush1.msra.mxu0 0.0
    %1196 = vmatprep.subr.mxu0 0.0
    %1197 = vmatpush1.msra.mxu0 0.0
    %1198 = vmatprep.subr.mxu0 0.0
    %1199 = vmatpush1.msra.mxu0 0.0
    %1200 = vmatprep.subr.mxu0 0.0
    %1201 = vmatpush1.msra.mxu0 0.0
    %1202 = vmatprep.subr.mxu0 0.0
    %1203 = vmatpush1.msra.mxu0 0.0
    %1204 = vmatprep.subr.mxu0 0.0
    %1205 = vmatpush1.msra.mxu0 0.0
    %1206 = vmatprep.subr.mxu0 0.0
    %1207 = vmatpush1.msra.mxu0 0.0
    %1208 = vmatprep.subr.mxu0 0.0
    %1209 = vmatpush1.msra.mxu0 0.0
    %1210 = vmatprep.subr.mxu0 0.0
    %1211 = vmatpush1.msra.mxu0 0.0
    %1212 = vmatprep.subr.mxu0 0.0
    %1213 = vmatpush1.msra.mxu0 0.0
    %1214 = vmatprep.subr.mxu0 0.0
    %1215 = vmatpush1.msra.mxu0 0.0
    %1216 = vmatprep.subr.mxu0 0.0
    %1217 = vmatpush1.msra.mxu0 0.0
    %1218 = vmatprep.subr.mxu0 0.0
    %1219 = vmatpush1.msra.mxu0 0.0
    %1220 = vmatprep.subr.mxu0 0.0
    %1221 = vmatpush1.msra.mxu0 0.0
    %1222 = vmatprep.subr.mxu0 0.0
    %1223 = vmatpush1.msra.mxu0 0.0
    %1224 = vmatprep.subr.mxu0 0.0
    %1225 = vmatpush1.msra.mxu0 0.0
    %1226 = vmatprep.subr.mxu0 0.0
    %1227 = vmatpush1.msra.mxu0 0.0
    %1228 = vmatprep.subr.mxu0 0.0
    %1229 = vmatpush1.msra.mxu0 0.0
    %1230 = vmatprep.subr.mxu0 0.0
    %1231 = vmatpush1.msra.mxu0 0.0
    %1232 = vmatprep.subr.mxu0 0.0
    %1233 = vmatpush1.msra.mxu0 0.0
    %1234 = vmatprep.subr.mxu0 0.0
    %1235 = vmatpush1.msra.mxu0 0.0
    %1236 = vmatprep.subr.mxu0 0.0
    %1237 = vmatpush1.msra.mxu0 0.0
    %1238 = vmatprep.mubr.f32.mxu0 0.0
    %v1239 = vand.u32 %v744, 4294901760
    %1240 = vmatmul.mubr.f32.gmra.mrb[0].mxu0 %v1239
    %v1241 = vpop.f32.mrb[0].mxu0
    %v1242 = vadd.f32 %v1163, %v1241
    %v1243 = vpop.f32.mrb[0].mxu0
    %1244 = vmatprep.mubr.f32.mxu0 0.0
    %v1245 = vand.u32 %v747, 4294901760
    %1246 = vmatmul.mubr.f32.gmra.mrb[0].mxu0 %v1245
    %v1247 = vpop.f32.mrb[0].mxu0
    %v1248 = vadd.f32 %v1169, %v1247
    %v1249 = vpop.f32.mrb[0].mxu0
    %1250 = vdwg.mxu0
    %v1251 = vld [vmem:[%s157] sm:$0xff]
    %v1252 = vld [vmem:[%s157 + $0x8] sm:$0xff]
    %v1253 = vmul.f32 %v1242, %v1251
    %v1254 = vmul.f32 %v1248, %v1252
    %vm1255 = vcmask 7168
    %v1256 = vsel %vm1255, %v1253, 0.0
    %v1257 = vsel %vm1255, %v1254, 0.0
    %v1258 = vadd.f32 %v1256, %v1257
    %1259 = vadd.xlane.f32.xlu0 %v1258
    %v1260 = vpop.xlane.xlu0 %1259
    %v1261 = vrot.slane %v1260, 4
    %v1262 = vadd.f32 %v1260, %v1261
    %v1263 = vrot.slane %v1262, 2
    %v1264 = vadd.f32 %v1262, %v1263
    %v1265 = vrot.slane %v1264, 1
    %v1266 = vadd.f32 %v1264, %v1265
    %s1267 = vtos %v1266
    %p1268 = scmp.eq.s32.totalorder %s168, %s169
    %s1269 = scalar_select %p1268, 1.0, 2.0
    %s1270 = smul.f32 %s1269, %s1267
    %v1271 = vstv %s1270
    %vm1272 = vcmask 0
    %1273 = vst.msk [vmem:[#allocation8] sm:$0x1] %vm1272, %v1271
    // Predicated region
    $region34: #{tpu_custom_call.1} parent=1 // pred_check
      _
    $region35: #{tpu_custom_call.1} parent=1 // pred_check_branch
      %1275 = sbr.rel (0) target = $region37
    $region36: #{tpu_custom_call.1} parent=1 // pred_region
      %s1277 = ssub.s32 16, 16
      %1278 = vsyncadd [#allocation6], %s1277
      %s1280 = sshll.u32 [#allocation8], 4
      %s1281 = int_to_ptr.vmem [resolvable:$true] %s1280
      %1283 = dma.vmem_to_hbm [thread:$0]  %s1281, 16, %s9, [#allocation6]
    $region37: #{tpu_custom_call.1} parent=1 // pred_fallthru
      _
    // Predicated region
    $region38: #{tpu_custom_call.1} parent=1 // pred_check
      _
    $region39: #{tpu_custom_call.1} parent=1 // pred_check_branch
      %1285 = sbr.rel (0) target = $region41
    $region40: #{tpu_custom_call.1} parent=1 // pred_region
      %1286 = dma.done [#allocation6], 16
    $region41: #{tpu_custom_call.1} parent=1 // pred_fallthru
      _
    %1287 = vsyncpa [#allocation6], 1
    %1288 = vsyncpa [#allocation7], 1

</llo_original>
